<compile_context>
chip_gen: v5e
topology: v5e:2x2
jax: 0.10.0
libtpu: 0.0.40
codegen_flags: <defaults>
</compile_context>

<pallas_src>
import functools

import jax
import jax.numpy as jnp
from jax.experimental import pallas as pl
from jax.experimental.pallas import tpu as pltpu


# ----------------------------------------------------------------------------
# Fused kernel: all LSTM layers over all timesteps + final Linear.
# Packed gate order (kernel-internal): [input, forget, output, cell(g)].
# ----------------------------------------------------------------------------
def _fused_lstm_fc_kernel(x2d_ref, *refs, num_layers, hidden, seq_len):
    """x2d_ref : (T*B, I) time-major flattened input (row t*B + b).

    refs (per layer l): w_ih_t (in_l, 4H), w_hh_t (H, 4H), b (1, 4H)
    then            : w_fc (H, O), b_fc (1, O), out (B, O)
    """
    L, H, T = num_layers, hidden, seq_len
    wih_refs = [refs[3 * l + 0] for l in range(L)]
    whh_refs = [refs[3 * l + 1] for l in range(L)]
    b_refs = [refs[3 * l + 2] for l in range(L)]
    wfc_ref = refs[3 * L]
    bfc_ref = refs[3 * L + 1]
    out_ref = refs[3 * L + 2]

    TB, _ = x2d_ref.shape
    B = TB // T

    # Weights loaded once; reused every timestep (no per-step DMA).
    wih = [wih_refs[l][...] for l in range(L)]
    whh = [whh_refs[l][...] for l in range(L)]
    # Bias broadcasts hoisted out of the unrolled loop (layer 0 folded below).
    b_bc = [jnp.broadcast_to(b_refs[l][...], (B, 4 * H)) for l in range(1, L)]

    # ---- Hoisted time-parallel layer-0 input projection: one MXU matmul ----
    gx0 = (jnp.dot(x2d_ref[...], wih[0], preferred_element_type=jnp.float32)
           + jnp.broadcast_to(b_refs[0][...], (TB, 4 * H)))      # (T*B, 4H)

    h = [jnp.zeros((B, H), jnp.float32) for _ in range(L)]
    c = [jnp.zeros((B, H), jnp.float32) for _ in range(L)]

    for t in range(T):                       # fully unrolled (T small, static)
        layer_in = None
        for l in range(L):
            if l == 0:
                gates = (gx0[t * B:(t + 1) * B, :]
                         + jnp.dot(h[0], whh[0],
                                   preferred_element_type=jnp.float32))
            else:
                # Two separate matmuls: no lane-dim concat on the serial path,
                # and the recurrent matmul depends only on t-1 state.
                gates = (jnp.dot(h[l], whh[l],
                                 preferred_element_type=jnp.float32)
                         + jnp.dot(layer_in, wih[l],
                                   preferred_element_type=jnp.float32)
                         + b_bc[l - 1])
            # Packed order [i, f, o, g]: 1 sigmoid over 3H + 1 tanh over H
            # (+ tanh(c)) = 3 EUP pushes per cell instead of 5.
            sig = jax.nn.sigmoid(gates[:, 0:3 * H])
            i_g = sig[:, 0 * H:1 * H]
            f_g = sig[:, 1 * H:2 * H]
            o_g = sig[:, 2 * H:3 * H]
            g_g = jnp.tanh(gates[:, 3 * H:4 * H])
            c[l] = f_g * c[l] + i_g * g_g
            h[l] = o_g * jnp.tanh(c[l])
            layer_in = h[l]

    # Final Linear on the last timestep's top-layer hidden state.
    out_ref[...] = (
        jnp.dot(h[L - 1], wfc_ref[...], preferred_element_type=jnp.float32)
        + bfc_ref[...]
    ).astype(out_ref.dtype)


# ----------------------------------------------------------------------------
# Forward pass matching LSTMModel.forward (inference semantics)
# ----------------------------------------------------------------------------
def lstm_model_forward(x_bti, packed, hidden_size):
    """x_bti: [B, T, I] batch-first (PyTorch layout) -> [B, output_size]."""
    B, T, _ = x_bti.shape
    num_layers = len(packed["lstm"])
    out_size = packed["fc"]["w_t"].shape[1]

    # Time-major flatten once in the wrapper (tiny XLA op); row = t*B + b.
    x_tb_i = jnp.transpose(x_bti, (1, 0, 2)).astype(jnp.float32)
    x2d = x_tb_i.reshape(T * B, x_tb_i.shape[-1])

    args = [x2d]
    for p in packed["lstm"]:
        args.extend((p["w_ih_t"], p["w_hh_t"], p["b"]))
    args.extend((packed["fc"]["w_t"], packed["fc"]["b"]))

    kernel = functools.partial(
        _fused_lstm_fc_kernel,
        num_layers=num_layers, hidden=hidden_size, seq_len=T)

    return pl.pallas_call(
        kernel,
        out_shape=jax.ShapeDtypeStruct((B, out_size), jnp.float32),
    )(*args)


# ----------------------------------------------------------------------------
# Parameters: raw PyTorch layout (gate order i,f,g,o) + kernel packing.
# ----------------------------------------------------------------------------
def init_raw_params(key, input_size, hidden_size, num_layers, output_size):
    """PyTorch-style params: w_ih (4H,in), w_hh (4H,H), b_ih/b_hh (4H,)."""
    raw = {"lstm": [], "fc": None}
    bound = float(hidden_size) ** -0.5
    for layer in range(num_layers):
        in_sz = input_size if layer == 0 else hidden_size
        key, k1, k2, k3, k4 = jax.random.split(key, 5)
        raw["lstm"].append({
            "w_ih": jax.random.uniform(k1, (4 * hidden_size, in_sz),
                                       jnp.float32, -bound, bound),
            "w_hh": jax.random.uniform(k2, (4 * hidden_size, hidden_size),
                                       jnp.float32, -bound, bound),
            "b_ih": jax.random.uniform(k3, (4 * hidden_size,),
                                       jnp.float32, -bound, bound),
            "b_hh": jax.random.uniform(k4, (4 * hidden_size,),
                                       jnp.float32, -bound, bound),
        })
    key, k5, k6 = jax.random.split(key, 3)
    raw["fc"] = {
        "w": jax.random.uniform(k5, (output_size, hidden_size),
                                jnp.float32, -bound, bound),
        "b": jax.random.uniform(k6, (output_size,),
                                jnp.float32, -bound, bound),
    }
    return raw


def _reorder_ifgo_to_ifog(a):
    """Re-order the 4H gate axis (axis 0) from PyTorch [i,f,g,o] to [i,f,o,g]."""
    i, f, g, o = jnp.split(a, 4, axis=0)
    return jnp.concatenate([i, f, o, g], axis=0)


def pack_params(raw):
    """One-time packing: transpose for (row) x (in,4H) matmuls, fold biases,
    re-order gates to [i,f,o,g] so activations batch into 2 EUP pushes."""
    packed = {"lstm": [], "fc": None}
    for p in raw["lstm"]:
        w_ih = _reorder_ifgo_to_ifog(p["w_ih"])         # (4H, in)
        w_hh = _reorder_ifgo_to_ifog(p["w_hh"])         # (4H, H)
        b = _reorder_ifgo_to_ifog(p["b_ih"] + p["b_hh"])  # (4H,)
        packed["lstm"].append({
            "w_ih_t": w_ih.T,            # (in, 4H)
            "w_hh_t": w_hh.T,            # (H, 4H)
            "b": b[None, :],             # (1, 4H)
        })
    packed["fc"] = {"w_t": raw["fc"]["w"].T, "b": raw["fc"]["b"][None, :]}
    return packed


# ----------------------------------------------------------------------------
# Pure-JAX reference (exact nn.LSTM inference semantics, PyTorch gate order)
# ----------------------------------------------------------------------------
def lstm_model_reference(x_bti, raw, hidden_size):
    B, T, _ = x_bti.shape
    L, H = len(raw["lstm"]), hidden_size
    h = [jnp.zeros((B, H), jnp.float32) for _ in range(L)]
    c = [jnp.zeros((B, H), jnp.float32) for _ in range(L)]
    for t in range(T):
        inp = x_bti[:, t, :]
        for l in range(L):
            p = raw["lstm"][l]
            gates = (inp @ p["w_ih"].T + h[l] @ p["w_hh"].T
                     + p["b_ih"] + p["b_hh"])
            i_g, f_g, g_g, o_g = jnp.split(gates, 4, axis=1)
            i_g = jax.nn.sigmoid(i_g)
            f_g = jax.nn.sigmoid(f_g)
            g_g = jnp.tanh(g_g)
            o_g = jax.nn.sigmoid(o_g)
            c[l] = f_g * c[l] + i_g * g_g
            h[l] = o_g * jnp.tanh(c[l])
            inp = h[l]
    return h[L - 1] @ raw["fc"]["w"].T + raw["fc"]["b"]


if __name__ == "__main__":
    # Small shapes consistent with the module.
    batch, seq = 2, 8
    input_size, hidden_size, num_layers, output_size = 16, 32, 2, 4
    dropout = 0.0  # inference: inter-layer dropout inactive

    key = jax.random.PRNGKey(0)
    key, kx = jax.random.split(key)
    x = jax.random.normal(kx, (batch, seq, input_size), jnp.float32)

    raw_params = init_raw_params(key, input_size, hidden_size,
                                 num_layers, output_size)
    packed_params = pack_params(raw_params)

    out = lstm_model_forward(x, packed_params, hidden_size)
    out = jax.block_until_ready(out)
    assert out.shape == (batch, output_size), out.shape

    ref = lstm_model_reference(x, raw_params, hidden_size)
    assert jnp.allclose(out, ref, atol=1e-5, rtol=1e-5), (
        float(jnp.max(jnp.abs(out - ref))))

    print("KERNEL_OK")
</pallas_src>

<mosaic_0001>
module attributes {stable_mosaic.version = 11 : i64} {
  func.func @_fused_lstm_fc_kernel(%arg0: memref<16x16xf32, #tpu.memory_space<vmem>>, %arg1: memref<16x128xf32, #tpu.memory_space<vmem>>, %arg2: memref<32x128xf32, #tpu.memory_space<vmem>>, %arg3: memref<1x128xf32, #tpu.memory_space<vmem>>, %arg4: memref<32x128xf32, #tpu.memory_space<vmem>>, %arg5: memref<32x128xf32, #tpu.memory_space<vmem>>, %arg6: memref<1x128xf32, #tpu.memory_space<vmem>>, %arg7: memref<32x4xf32, #tpu.memory_space<vmem>>, %arg8: memref<1x4xf32, #tpu.memory_space<vmem>>, %arg9: memref<2x4xf32, #tpu.memory_space<vmem>>) attributes {dimension_semantics = [], scalar_prefetch = 0 : i64, scratch_operands = 0 : i64, tpu.core_type = #tpu.core_type<tc>} {
    %c0 = arith.constant 0 : index
    %c0_0 = arith.constant 0 : index
    %0 = vector.load %arg1[%c0, %c0_0] : memref<16x128xf32, #tpu.memory_space<vmem>>, vector<16x128xf32>
    %c0_1 = arith.constant 0 : index
    %c0_2 = arith.constant 0 : index
    %1 = vector.load %arg4[%c0_1, %c0_2] : memref<32x128xf32, #tpu.memory_space<vmem>>, vector<32x128xf32>
    %c0_3 = arith.constant 0 : index
    %c0_4 = arith.constant 0 : index
    %2 = vector.load %arg2[%c0_3, %c0_4] : memref<32x128xf32, #tpu.memory_space<vmem>>, vector<32x128xf32>
    %c0_5 = arith.constant 0 : index
    %c0_6 = arith.constant 0 : index
    %3 = vector.load %arg5[%c0_5, %c0_6] : memref<32x128xf32, #tpu.memory_space<vmem>>, vector<32x128xf32>
    %c0_7 = arith.constant 0 : index
    %c0_8 = arith.constant 0 : index
    %4 = vector.load %arg6[%c0_7, %c0_8] : memref<1x128xf32, #tpu.memory_space<vmem>>, vector<1x128xf32>
    %5 = vector.shape_cast %4 : vector<1x128xf32> to vector<1x128xf32>
    %6 = vector.broadcast %5 : vector<1x128xf32> to vector<2x128xf32>
    %c0_9 = arith.constant 0 : index
    %c0_10 = arith.constant 0 : index
    %7 = vector.load %arg0[%c0_9, %c0_10] : memref<16x16xf32, #tpu.memory_space<vmem>>, vector<16x16xf32>
    %cst = arith.constant dense<0.000000e+00> : vector<16x128xf32>
    %8 = tpu.matmul %7, %0, %cst {dimension_numbers = #tpu.dot_dimension_numbers<[1], [0], [0], [1], [0, 0, 1, 1], [], []>} : vector<16x16xf32>, vector<16x128xf32>, vector<16x128xf32> -> vector<16x128xf32>
    %c0_11 = arith.constant 0 : index
    %c0_12 = arith.constant 0 : index
    %9 = vector.load %arg3[%c0_11, %c0_12] : memref<1x128xf32, #tpu.memory_space<vmem>>, vector<1x128xf32>
    %10 = vector.shape_cast %9 : vector<1x128xf32> to vector<1x128xf32>
    %11 = vector.broadcast %10 : vector<1x128xf32> to vector<16x128xf32>
    %12 = arith.addf %8, %11 : vector<16x128xf32>
    %cst_13 = arith.constant 0.000000e+00 : f32
    %13 = vector.broadcast %cst_13 : f32 to vector<2x32xf32>
    %cst_14 = arith.constant 0.000000e+00 : f32
    %14 = vector.broadcast %cst_14 : f32 to vector<2x32xf32>
    %cst_15 = arith.constant 0.000000e+00 : f32
    %15 = vector.broadcast %cst_15 : f32 to vector<2x32xf32>
    %cst_16 = arith.constant 0.000000e+00 : f32
    %16 = vector.broadcast %cst_16 : f32 to vector<2x32xf32>
    %17 = vector.extract_strided_slice %12 {offsets = [0, 0], sizes = [2, 128], strides = [1, 1]} : vector<16x128xf32> to vector<2x128xf32>
    %cst_17 = arith.constant dense<0.000000e+00> : vector<2x128xf32>
    %18 = tpu.matmul %13, %2, %cst_17 {dimension_numbers = #tpu.dot_dimension_numbers<[1], [0], [0], [1], [0, 0, 1, 1], [], []>} : vector<2x32xf32>, vector<32x128xf32>, vector<2x128xf32> -> vector<2x128xf32>
    %19 = arith.addf %17, %18 : vector<2x128xf32>
    %20 = vector.extract_strided_slice %19 {offsets = [0, 0], sizes = [2, 96], strides = [1, 1]} : vector<2x128xf32> to vector<2x96xf32>
    %21 = arith.negf %20 : vector<2x96xf32>
    %22 = math.exp %21 : vector<2x96xf32>
    %cst_18 = arith.constant 1.000000e+00 : f32
    %23 = vector.broadcast %cst_18 : f32 to vector<2x96xf32>
    %24 = arith.addf %23, %22 : vector<2x96xf32>
    %25 = arith.divf %23, %24 : vector<2x96xf32>
    %26 = vector.extract_strided_slice %25 {offsets = [0, 0], sizes = [2, 32], strides = [1, 1]} : vector<2x96xf32> to vector<2x32xf32>
    %27 = vector.extract_strided_slice %25 {offsets = [0, 32], sizes = [2, 32], strides = [1, 1]} : vector<2x96xf32> to vector<2x32xf32>
    %28 = vector.extract_strided_slice %25 {offsets = [0, 64], sizes = [2, 32], strides = [1, 1]} : vector<2x96xf32> to vector<2x32xf32>
    %29 = vector.extract_strided_slice %19 {offsets = [0, 96], sizes = [2, 32], strides = [1, 1]} : vector<2x128xf32> to vector<2x32xf32>
    %30 = math.tanh %29 : vector<2x32xf32>
    %31 = arith.mulf %27, %15 : vector<2x32xf32>
    %32 = arith.mulf %26, %30 : vector<2x32xf32>
    %33 = arith.addf %31, %32 : vector<2x32xf32>
    %34 = math.tanh %33 : vector<2x32xf32>
    %35 = arith.mulf %28, %34 : vector<2x32xf32>
    %cst_19 = arith.constant dense<0.000000e+00> : vector<2x128xf32>
    %36 = tpu.matmul %14, %3, %cst_19 {dimension_numbers = #tpu.dot_dimension_numbers<[1], [0], [0], [1], [0, 0, 1, 1], [], []>} : vector<2x32xf32>, vector<32x128xf32>, vector<2x128xf32> -> vector<2x128xf32>
    %cst_20 = arith.constant dense<0.000000e+00> : vector<2x128xf32>
    %37 = tpu.matmul %35, %1, %cst_20 {dimension_numbers = #tpu.dot_dimension_numbers<[1], [0], [0], [1], [0, 0, 1, 1], [], []>} : vector<2x32xf32>, vector<32x128xf32>, vector<2x128xf32> -> vector<2x128xf32>
    %38 = arith.addf %36, %37 : vector<2x128xf32>
    %39 = arith.addf %38, %6 : vector<2x128xf32>
    %40 = vector.extract_strided_slice %39 {offsets = [0, 0], sizes = [2, 96], strides = [1, 1]} : vector<2x128xf32> to vector<2x96xf32>
    %41 = arith.negf %40 : vector<2x96xf32>
    %42 = math.exp %41 : vector<2x96xf32>
    %cst_21 = arith.constant 1.000000e+00 : f32
    %43 = vector.broadcast %cst_21 : f32 to vector<2x96xf32>
    %44 = arith.addf %43, %42 : vector<2x96xf32>
    %45 = arith.divf %43, %44 : vector<2x96xf32>
    %46 = vector.extract_strided_slice %45 {offsets = [0, 0], sizes = [2, 32], strides = [1, 1]} : vector<2x96xf32> to vector<2x32xf32>
    %47 = vector.extract_strided_slice %45 {offsets = [0, 32], sizes = [2, 32], strides = [1, 1]} : vector<2x96xf32> to vector<2x32xf32>
    %48 = vector.extract_strided_slice %45 {offsets = [0, 64], sizes = [2, 32], strides = [1, 1]} : vector<2x96xf32> to vector<2x32xf32>
    %49 = vector.extract_strided_slice %39 {offsets = [0, 96], sizes = [2, 32], strides = [1, 1]} : vector<2x128xf32> to vector<2x32xf32>
    %50 = math.tanh %49 : vector<2x32xf32>
    %51 = arith.mulf %47, %16 : vector<2x32xf32>
    %52 = arith.mulf %46, %50 : vector<2x32xf32>
    %53 = arith.addf %51, %52 : vector<2x32xf32>
    %54 = math.tanh %53 : vector<2x32xf32>
    %55 = arith.mulf %48, %54 : vector<2x32xf32>
    %56 = vector.extract_strided_slice %12 {offsets = [2, 0], sizes = [2, 128], strides = [1, 1]} : vector<16x128xf32> to vector<2x128xf32>
    %cst_22 = arith.constant dense<0.000000e+00> : vector<2x128xf32>
    %57 = tpu.matmul %35, %2, %cst_22 {dimension_numbers = #tpu.dot_dimension_numbers<[1], [0], [0], [1], [0, 0, 1, 1], [], []>} : vector<2x32xf32>, vector<32x128xf32>, vector<2x128xf32> -> vector<2x128xf32>
    %58 = arith.addf %56, %57 : vector<2x128xf32>
    %59 = vector.extract_strided_slice %58 {offsets = [0, 0], sizes = [2, 96], strides = [1, 1]} : vector<2x128xf32> to vector<2x96xf32>
    %60 = arith.negf %59 : vector<2x96xf32>
    %61 = math.exp %60 : vector<2x96xf32>
    %cst_23 = arith.constant 1.000000e+00 : f32
    %62 = vector.broadcast %cst_23 : f32 to vector<2x96xf32>
    %63 = arith.addf %62, %61 : vector<2x96xf32>
    %64 = arith.divf %62, %63 : vector<2x96xf32>
    %65 = vector.extract_strided_slice %64 {offsets = [0, 0], sizes = [2, 32], strides = [1, 1]} : vector<2x96xf32> to vector<2x32xf32>
    %66 = vector.extract_strided_slice %64 {offsets = [0, 32], sizes = [2, 32], strides = [1, 1]} : vector<2x96xf32> to vector<2x32xf32>
    %67 = vector.extract_strided_slice %64 {offsets = [0, 64], sizes = [2, 32], strides = [1, 1]} : vector<2x96xf32> to vector<2x32xf32>
    %68 = vector.extract_strided_slice %58 {offsets = [0, 96], sizes = [2, 32], strides = [1, 1]} : vector<2x128xf32> to vector<2x32xf32>
    %69 = math.tanh %68 : vector<2x32xf32>
    %70 = arith.mulf %66, %33 : vector<2x32xf32>
    %71 = arith.mulf %65, %69 : vector<2x32xf32>
    %72 = arith.addf %70, %71 : vector<2x32xf32>
    %73 = math.tanh %72 : vector<2x32xf32>
    %74 = arith.mulf %67, %73 : vector<2x32xf32>
    %cst_24 = arith.constant dense<0.000000e+00> : vector<2x128xf32>
    %75 = tpu.matmul %55, %3, %cst_24 {dimension_numbers = #tpu.dot_dimension_numbers<[1], [0], [0], [1], [0, 0, 1, 1], [], []>} : vector<2x32xf32>, vector<32x128xf32>, vector<2x128xf32> -> vector<2x128xf32>
    %cst_25 = arith.constant dense<0.000000e+00> : vector<2x128xf32>
    %76 = tpu.matmul %74, %1, %cst_25 {dimension_numbers = #tpu.dot_dimension_numbers<[1], [0], [0], [1], [0, 0, 1, 1], [], []>} : vector<2x32xf32>, vector<32x128xf32>, vector<2x128xf32> -> vector<2x128xf32>
    %77 = arith.addf %75, %76 : vector<2x128xf32>
    %78 = arith.addf %77, %6 : vector<2x128xf32>
    %79 = vector.extract_strided_slice %78 {offsets = [0, 0], sizes = [2, 96], strides = [1, 1]} : vector<2x128xf32> to vector<2x96xf32>
    %80 = arith.negf %79 : vector<2x96xf32>
    %81 = math.exp %80 : vector<2x96xf32>
    %cst_26 = arith.constant 1.000000e+00 : f32
    %82 = vector.broadcast %cst_26 : f32 to vector<2x96xf32>
    %83 = arith.addf %82, %81 : vector<2x96xf32>
    %84 = arith.divf %82, %83 : vector<2x96xf32>
    %85 = vector.extract_strided_slice %84 {offsets = [0, 0], sizes = [2, 32], strides = [1, 1]} : vector<2x96xf32> to vector<2x32xf32>
    %86 = vector.extract_strided_slice %84 {offsets = [0, 32], sizes = [2, 32], strides = [1, 1]} : vector<2x96xf32> to vector<2x32xf32>
    %87 = vector.extract_strided_slice %84 {offsets = [0, 64], sizes = [2, 32], strides = [1, 1]} : vector<2x96xf32> to vector<2x32xf32>
    %88 = vector.extract_strided_slice %78 {offsets = [0, 96], sizes = [2, 32], strides = [1, 1]} : vector<2x128xf32> to vector<2x32xf32>
    %89 = math.tanh %88 : vector<2x32xf32>
    %90 = arith.mulf %86, %53 : vector<2x32xf32>
    %91 = arith.mulf %85, %89 : vector<2x32xf32>
    %92 = arith.addf %90, %91 : vector<2x32xf32>
    %93 = math.tanh %92 : vector<2x32xf32>
    %94 = arith.mulf %87, %93 : vector<2x32xf32>
    %95 = vector.extract_strided_slice %12 {offsets = [4, 0], sizes = [2, 128], strides = [1, 1]} : vector<16x128xf32> to vector<2x128xf32>
    %cst_27 = arith.constant dense<0.000000e+00> : vector<2x128xf32>
    %96 = tpu.matmul %74, %2, %cst_27 {dimension_numbers = #tpu.dot_dimension_numbers<[1], [0], [0], [1], [0, 0, 1, 1], [], []>} : vector<2x32xf32>, vector<32x128xf32>, vector<2x128xf32> -> vector<2x128xf32>
    %97 = arith.addf %95, %96 : vector<2x128xf32>
    %98 = vector.extract_strided_slice %97 {offsets = [0, 0], sizes = [2, 96], strides = [1, 1]} : vector<2x128xf32> to vector<2x96xf32>
    %99 = arith.negf %98 : vector<2x96xf32>
    %100 = math.exp %99 : vector<2x96xf32>
    %cst_28 = arith.constant 1.000000e+00 : f32
    %101 = vector.broadcast %cst_28 : f32 to vector<2x96xf32>
    %102 = arith.addf %101, %100 : vector<2x96xf32>
    %103 = arith.divf %101, %102 : vector<2x96xf32>
    %104 = vector.extract_strided_slice %103 {offsets = [0, 0], sizes = [2, 32], strides = [1, 1]} : vector<2x96xf32> to vector<2x32xf32>
    %105 = vector.extract_strided_slice %103 {offsets = [0, 32], sizes = [2, 32], strides = [1, 1]} : vector<2x96xf32> to vector<2x32xf32>
    %106 = vector.extract_strided_slice %103 {offsets = [0, 64], sizes = [2, 32], strides = [1, 1]} : vector<2x96xf32> to vector<2x32xf32>
    %107 = vector.extract_strided_slice %97 {offsets = [0, 96], sizes = [2, 32], strides = [1, 1]} : vector<2x128xf32> to vector<2x32xf32>
    %108 = math.tanh %107 : vector<2x32xf32>
    %109 = arith.mulf %105, %72 : vector<2x32xf32>
    %110 = arith.mulf %104, %108 : vector<2x32xf32>
    %111 = arith.addf %109, %110 : vector<2x32xf32>
    %112 = math.tanh %111 : vector<2x32xf32>
    %113 = arith.mulf %106, %112 : vector<2x32xf32>
    %cst_29 = arith.constant dense<0.000000e+00> : vector<2x128xf32>
    %114 = tpu.matmul %94, %3, %cst_29 {dimension_numbers = #tpu.dot_dimension_numbers<[1], [0], [0], [1], [0, 0, 1, 1], [], []>} : vector<2x32xf32>, vector<32x128xf32>, vector<2x128xf32> -> vector<2x128xf32>
    %cst_30 = arith.constant dense<0.000000e+00> : vector<2x128xf32>
    %115 = tpu.matmul %113, %1, %cst_30 {dimension_numbers = #tpu.dot_dimension_numbers<[1], [0], [0], [1], [0, 0, 1, 1], [], []>} : vector<2x32xf32>, vector<32x128xf32>, vector<2x128xf32> -> vector<2x128xf32>
    %116 = arith.addf %114, %115 : vector<2x128xf32>
    %117 = arith.addf %116, %6 : vector<2x128xf32>
    %118 = vector.extract_strided_slice %117 {offsets = [0, 0], sizes = [2, 96], strides = [1, 1]} : vector<2x128xf32> to vector<2x96xf32>
    %119 = arith.negf %118 : vector<2x96xf32>
    %120 = math.exp %119 : vector<2x96xf32>
    %cst_31 = arith.constant 1.000000e+00 : f32
    %121 = vector.broadcast %cst_31 : f32 to vector<2x96xf32>
    %122 = arith.addf %121, %120 : vector<2x96xf32>
    %123 = arith.divf %121, %122 : vector<2x96xf32>
    %124 = vector.extract_strided_slice %123 {offsets = [0, 0], sizes = [2, 32], strides = [1, 1]} : vector<2x96xf32> to vector<2x32xf32>
    %125 = vector.extract_strided_slice %123 {offsets = [0, 32], sizes = [2, 32], strides = [1, 1]} : vector<2x96xf32> to vector<2x32xf32>
    %126 = vector.extract_strided_slice %123 {offsets = [0, 64], sizes = [2, 32], strides = [1, 1]} : vector<2x96xf32> to vector<2x32xf32>
    %127 = vector.extract_strided_slice %117 {offsets = [0, 96], sizes = [2, 32], strides = [1, 1]} : vector<2x128xf32> to vector<2x32xf32>
    %128 = math.tanh %127 : vector<2x32xf32>
    %129 = arith.mulf %125, %92 : vector<2x32xf32>
    %130 = arith.mulf %124, %128 : vector<2x32xf32>
    %131 = arith.addf %129, %130 : vector<2x32xf32>
    %132 = math.tanh %131 : vector<2x32xf32>
    %133 = arith.mulf %126, %132 : vector<2x32xf32>
    %134 = vector.extract_strided_slice %12 {offsets = [6, 0], sizes = [2, 128], strides = [1, 1]} : vector<16x128xf32> to vector<2x128xf32>
    %cst_32 = arith.constant dense<0.000000e+00> : vector<2x128xf32>
    %135 = tpu.matmul %113, %2, %cst_32 {dimension_numbers = #tpu.dot_dimension_numbers<[1], [0], [0], [1], [0, 0, 1, 1], [], []>} : vector<2x32xf32>, vector<32x128xf32>, vector<2x128xf32> -> vector<2x128xf32>
    %136 = arith.addf %134, %135 : vector<2x128xf32>
    %137 = vector.extract_strided_slice %136 {offsets = [0, 0], sizes = [2, 96], strides = [1, 1]} : vector<2x128xf32> to vector<2x96xf32>
    %138 = arith.negf %137 : vector<2x96xf32>
    %139 = math.exp %138 : vector<2x96xf32>
    %cst_33 = arith.constant 1.000000e+00 : f32
    %140 = vector.broadcast %cst_33 : f32 to vector<2x96xf32>
    %141 = arith.addf %140, %139 : vector<2x96xf32>
    %142 = arith.divf %140, %141 : vector<2x96xf32>
    %143 = vector.extract_strided_slice %142 {offsets = [0, 0], sizes = [2, 32], strides = [1, 1]} : vector<2x96xf32> to vector<2x32xf32>
    %144 = vector.extract_strided_slice %142 {offsets = [0, 32], sizes = [2, 32], strides = [1, 1]} : vector<2x96xf32> to vector<2x32xf32>
    %145 = vector.extract_strided_slice %142 {offsets = [0, 64], sizes = [2, 32], strides = [1, 1]} : vector<2x96xf32> to vector<2x32xf32>
    %146 = vector.extract_strided_slice %136 {offsets = [0, 96], sizes = [2, 32], strides = [1, 1]} : vector<2x128xf32> to vector<2x32xf32>
    %147 = math.tanh %146 : vector<2x32xf32>
    %148 = arith.mulf %144, %111 : vector<2x32xf32>
    %149 = arith.mulf %143, %147 : vector<2x32xf32>
    %150 = arith.addf %148, %149 : vector<2x32xf32>
    %151 = math.tanh %150 : vector<2x32xf32>
    %152 = arith.mulf %145, %151 : vector<2x32xf32>
    %cst_34 = arith.constant dense<0.000000e+00> : vector<2x128xf32>
    %153 = tpu.matmul %133, %3, %cst_34 {dimension_numbers = #tpu.dot_dimension_numbers<[1], [0], [0], [1], [0, 0, 1, 1], [], []>} : vector<2x32xf32>, vector<32x128xf32>, vector<2x128xf32> -> vector<2x128xf32>
    %cst_35 = arith.constant dense<0.000000e+00> : vector<2x128xf32>
    %154 = tpu.matmul %152, %1, %cst_35 {dimension_numbers = #tpu.dot_dimension_numbers<[1], [0], [0], [1], [0, 0, 1, 1], [], []>} : vector<2x32xf32>, vector<32x128xf32>, vector<2x128xf32> -> vector<2x128xf32>
    %155 = arith.addf %153, %154 : vector<2x128xf32>
    %156 = arith.addf %155, %6 : vector<2x128xf32>
    %157 = vector.extract_strided_slice %156 {offsets = [0, 0], sizes = [2, 96], strides = [1, 1]} : vector<2x128xf32> to vector<2x96xf32>
    %158 = arith.negf %157 : vector<2x96xf32>
    %159 = math.exp %158 : vector<2x96xf32>
    %cst_36 = arith.constant 1.000000e+00 : f32
    %160 = vector.broadcast %cst_36 : f32 to vector<2x96xf32>
    %161 = arith.addf %160, %159 : vector<2x96xf32>
    %162 = arith.divf %160, %161 : vector<2x96xf32>
    %163 = vector.extract_strided_slice %162 {offsets = [0, 0], sizes = [2, 32], strides = [1, 1]} : vector<2x96xf32> to vector<2x32xf32>
    %164 = vector.extract_strided_slice %162 {offsets = [0, 32], sizes = [2, 32], strides = [1, 1]} : vector<2x96xf32> to vector<2x32xf32>
    %165 = vector.extract_strided_slice %162 {offsets = [0, 64], sizes = [2, 32], strides = [1, 1]} : vector<2x96xf32> to vector<2x32xf32>
    %166 = vector.extract_strided_slice %156 {offsets = [0, 96], sizes = [2, 32], strides = [1, 1]} : vector<2x128xf32> to vector<2x32xf32>
    %167 = math.tanh %166 : vector<2x32xf32>
    %168 = arith.mulf %164, %131 : vector<2x32xf32>
    %169 = arith.mulf %163, %167 : vector<2x32xf32>
    %170 = arith.addf %168, %169 : vector<2x32xf32>
    %171 = math.tanh %170 : vector<2x32xf32>
    %172 = arith.mulf %165, %171 : vector<2x32xf32>
    %173 = vector.extract_strided_slice %12 {offsets = [8, 0], sizes = [2, 128], strides = [1, 1]} : vector<16x128xf32> to vector<2x128xf32>
    %cst_37 = arith.constant dense<0.000000e+00> : vector<2x128xf32>
    %174 = tpu.matmul %152, %2, %cst_37 {dimension_numbers = #tpu.dot_dimension_numbers<[1], [0], [0], [1], [0, 0, 1, 1], [], []>} : vector<2x32xf32>, vector<32x128xf32>, vector<2x128xf32> -> vector<2x128xf32>
    %175 = arith.addf %173, %174 : vector<2x128xf32>
    %176 = vector.extract_strided_slice %175 {offsets = [0, 0], sizes = [2, 96], strides = [1, 1]} : vector<2x128xf32> to vector<2x96xf32>
    %177 = arith.negf %176 : vector<2x96xf32>
    %178 = math.exp %177 : vector<2x96xf32>
    %cst_38 = arith.constant 1.000000e+00 : f32
    %179 = vector.broadcast %cst_38 : f32 to vector<2x96xf32>
    %180 = arith.addf %179, %178 : vector<2x96xf32>
    %181 = arith.divf %179, %180 : vector<2x96xf32>
    %182 = vector.extract_strided_slice %181 {offsets = [0, 0], sizes = [2, 32], strides = [1, 1]} : vector<2x96xf32> to vector<2x32xf32>
    %183 = vector.extract_strided_slice %181 {offsets = [0, 32], sizes = [2, 32], strides = [1, 1]} : vector<2x96xf32> to vector<2x32xf32>
    %184 = vector.extract_strided_slice %181 {offsets = [0, 64], sizes = [2, 32], strides = [1, 1]} : vector<2x96xf32> to vector<2x32xf32>
    %185 = vector.extract_strided_slice %175 {offsets = [0, 96], sizes = [2, 32], strides = [1, 1]} : vector<2x128xf32> to vector<2x32xf32>
    %186 = math.tanh %185 : vector<2x32xf32>
    %187 = arith.mulf %183, %150 : vector<2x32xf32>
    %188 = arith.mulf %182, %186 : vector<2x32xf32>
    %189 = arith.addf %187, %188 : vector<2x32xf32>
    %190 = math.tanh %189 : vector<2x32xf32>
    %191 = arith.mulf %184, %190 : vector<2x32xf32>
    %cst_39 = arith.constant dense<0.000000e+00> : vector<2x128xf32>
    %192 = tpu.matmul %172, %3, %cst_39 {dimension_numbers = #tpu.dot_dimension_numbers<[1], [0], [0], [1], [0, 0, 1, 1], [], []>} : vector<2x32xf32>, vector<32x128xf32>, vector<2x128xf32> -> vector<2x128xf32>
    %cst_40 = arith.constant dense<0.000000e+00> : vector<2x128xf32>
    %193 = tpu.matmul %191, %1, %cst_40 {dimension_numbers = #tpu.dot_dimension_numbers<[1], [0], [0], [1], [0, 0, 1, 1], [], []>} : vector<2x32xf32>, vector<32x128xf32>, vector<2x128xf32> -> vector<2x128xf32>
    %194 = arith.addf %192, %193 : vector<2x128xf32>
    %195 = arith.addf %194, %6 : vector<2x128xf32>
    %196 = vector.extract_strided_slice %195 {offsets = [0, 0], sizes = [2, 96], strides = [1, 1]} : vector<2x128xf32> to vector<2x96xf32>
    %197 = arith.negf %196 : vector<2x96xf32>
    %198 = math.exp %197 : vector<2x96xf32>
    %cst_41 = arith.constant 1.000000e+00 : f32
    %199 = vector.broadcast %cst_41 : f32 to vector<2x96xf32>
    %200 = arith.addf %199, %198 : vector<2x96xf32>
    %201 = arith.divf %199, %200 : vector<2x96xf32>
    %202 = vector.extract_strided_slice %201 {offsets = [0, 0], sizes = [2, 32], strides = [1, 1]} : vector<2x96xf32> to vector<2x32xf32>
    %203 = vector.extract_strided_slice %201 {offsets = [0, 32], sizes = [2, 32], strides = [1, 1]} : vector<2x96xf32> to vector<2x32xf32>
    %204 = vector.extract_strided_slice %201 {offsets = [0, 64], sizes = [2, 32], strides = [1, 1]} : vector<2x96xf32> to vector<2x32xf32>
    %205 = vector.extract_strided_slice %195 {offsets = [0, 96], sizes = [2, 32], strides = [1, 1]} : vector<2x128xf32> to vector<2x32xf32>
    %206 = math.tanh %205 : vector<2x32xf32>
    %207 = arith.mulf %203, %170 : vector<2x32xf32>
    %208 = arith.mulf %202, %206 : vector<2x32xf32>
    %209 = arith.addf %207, %208 : vector<2x32xf32>
    %210 = math.tanh %209 : vector<2x32xf32>
    %211 = arith.mulf %204, %210 : vector<2x32xf32>
    %212 = vector.extract_strided_slice %12 {offsets = [10, 0], sizes = [2, 128], strides = [1, 1]} : vector<16x128xf32> to vector<2x128xf32>
    %cst_42 = arith.constant dense<0.000000e+00> : vector<2x128xf32>
    %213 = tpu.matmul %191, %2, %cst_42 {dimension_numbers = #tpu.dot_dimension_numbers<[1], [0], [0], [1], [0, 0, 1, 1], [], []>} : vector<2x32xf32>, vector<32x128xf32>, vector<2x128xf32> -> vector<2x128xf32>
    %214 = arith.addf %212, %213 : vector<2x128xf32>
    %215 = vector.extract_strided_slice %214 {offsets = [0, 0], sizes = [2, 96], strides = [1, 1]} : vector<2x128xf32> to vector<2x96xf32>
    %216 = arith.negf %215 : vector<2x96xf32>
    %217 = math.exp %216 : vector<2x96xf32>
    %cst_43 = arith.constant 1.000000e+00 : f32
    %218 = vector.broadcast %cst_43 : f32 to vector<2x96xf32>
    %219 = arith.addf %218, %217 : vector<2x96xf32>
    %220 = arith.divf %218, %219 : vector<2x96xf32>
    %221 = vector.extract_strided_slice %220 {offsets = [0, 0], sizes = [2, 32], strides = [1, 1]} : vector<2x96xf32> to vector<2x32xf32>
    %222 = vector.extract_strided_slice %220 {offsets = [0, 32], sizes = [2, 32], strides = [1, 1]} : vector<2x96xf32> to vector<2x32xf32>
    %223 = vector.extract_strided_slice %220 {offsets = [0, 64], sizes = [2, 32], strides = [1, 1]} : vector<2x96xf32> to vector<2x32xf32>
    %224 = vector.extract_strided_slice %214 {offsets = [0, 96], sizes = [2, 32], strides = [1, 1]} : vector<2x128xf32> to vector<2x32xf32>
    %225 = math.tanh %224 : vector<2x32xf32>
    %226 = arith.mulf %222, %189 : vector<2x32xf32>
    %227 = arith.mulf %221, %225 : vector<2x32xf32>
    %228 = arith.addf %226, %227 : vector<2x32xf32>
    %229 = math.tanh %228 : vector<2x32xf32>
    %230 = arith.mulf %223, %229 : vector<2x32xf32>
    %cst_44 = arith.constant dense<0.000000e+00> : vector<2x128xf32>
    %231 = tpu.matmul %211, %3, %cst_44 {dimension_numbers = #tpu.dot_dimension_numbers<[1], [0], [0], [1], [0, 0, 1, 1], [], []>} : vector<2x32xf32>, vector<32x128xf32>, vector<2x128xf32> -> vector<2x128xf32>
    %cst_45 = arith.constant dense<0.000000e+00> : vector<2x128xf32>
    %232 = tpu.matmul %230, %1, %cst_45 {dimension_numbers = #tpu.dot_dimension_numbers<[1], [0], [0], [1], [0, 0, 1, 1], [], []>} : vector<2x32xf32>, vector<32x128xf32>, vector<2x128xf32> -> vector<2x128xf32>
    %233 = arith.addf %231, %232 : vector<2x128xf32>
    %234 = arith.addf %233, %6 : vector<2x128xf32>
    %235 = vector.extract_strided_slice %234 {offsets = [0, 0], sizes = [2, 96], strides = [1, 1]} : vector<2x128xf32> to vector<2x96xf32>
    %236 = arith.negf %235 : vector<2x96xf32>
    %237 = math.exp %236 : vector<2x96xf32>
    %cst_46 = arith.constant 1.000000e+00 : f32
    %238 = vector.broadcast %cst_46 : f32 to vector<2x96xf32>
    %239 = arith.addf %238, %237 : vector<2x96xf32>
    %240 = arith.divf %238, %239 : vector<2x96xf32>
    %241 = vector.extract_strided_slice %240 {offsets = [0, 0], sizes = [2, 32], strides = [1, 1]} : vector<2x96xf32> to vector<2x32xf32>
    %242 = vector.extract_strided_slice %240 {offsets = [0, 32], sizes = [2, 32], strides = [1, 1]} : vector<2x96xf32> to vector<2x32xf32>
    %243 = vector.extract_strided_slice %240 {offsets = [0, 64], sizes = [2, 32], strides = [1, 1]} : vector<2x96xf32> to vector<2x32xf32>
    %244 = vector.extract_strided_slice %234 {offsets = [0, 96], sizes = [2, 32], strides = [1, 1]} : vector<2x128xf32> to vector<2x32xf32>
    %245 = math.tanh %244 : vector<2x32xf32>
    %246 = arith.mulf %242, %209 : vector<2x32xf32>
    %247 = arith.mulf %241, %245 : vector<2x32xf32>
    %248 = arith.addf %246, %247 : vector<2x32xf32>
    %249 = math.tanh %248 : vector<2x32xf32>
    %250 = arith.mulf %243, %249 : vector<2x32xf32>
    %251 = vector.extract_strided_slice %12 {offsets = [12, 0], sizes = [2, 128], strides = [1, 1]} : vector<16x128xf32> to vector<2x128xf32>
    %cst_47 = arith.constant dense<0.000000e+00> : vector<2x128xf32>
    %252 = tpu.matmul %230, %2, %cst_47 {dimension_numbers = #tpu.dot_dimension_numbers<[1], [0], [0], [1], [0, 0, 1, 1], [], []>} : vector<2x32xf32>, vector<32x128xf32>, vector<2x128xf32> -> vector<2x128xf32>
    %253 = arith.addf %251, %252 : vector<2x128xf32>
    %254 = vector.extract_strided_slice %253 {offsets = [0, 0], sizes = [2, 96], strides = [1, 1]} : vector<2x128xf32> to vector<2x96xf32>
    %255 = arith.negf %254 : vector<2x96xf32>
    %256 = math.exp %255 : vector<2x96xf32>
    %cst_48 = arith.constant 1.000000e+00 : f32
    %257 = vector.broadcast %cst_48 : f32 to vector<2x96xf32>
    %258 = arith.addf %257, %256 : vector<2x96xf32>
    %259 = arith.divf %257, %258 : vector<2x96xf32>
    %260 = vector.extract_strided_slice %259 {offsets = [0, 0], sizes = [2, 32], strides = [1, 1]} : vector<2x96xf32> to vector<2x32xf32>
    %261 = vector.extract_strided_slice %259 {offsets = [0, 32], sizes = [2, 32], strides = [1, 1]} : vector<2x96xf32> to vector<2x32xf32>
    %262 = vector.extract_strided_slice %259 {offsets = [0, 64], sizes = [2, 32], strides = [1, 1]} : vector<2x96xf32> to vector<2x32xf32>
    %263 = vector.extract_strided_slice %253 {offsets = [0, 96], sizes = [2, 32], strides = [1, 1]} : vector<2x128xf32> to vector<2x32xf32>
    %264 = math.tanh %263 : vector<2x32xf32>
    %265 = arith.mulf %261, %228 : vector<2x32xf32>
    %266 = arith.mulf %260, %264 : vector<2x32xf32>
    %267 = arith.addf %265, %266 : vector<2x32xf32>
    %268 = math.tanh %267 : vector<2x32xf32>
    %269 = arith.mulf %262, %268 : vector<2x32xf32>
    %cst_49 = arith.constant dense<0.000000e+00> : vector<2x128xf32>
    %270 = tpu.matmul %250, %3, %cst_49 {dimension_numbers = #tpu.dot_dimension_numbers<[1], [0], [0], [1], [0, 0, 1, 1], [], []>} : vector<2x32xf32>, vector<32x128xf32>, vector<2x128xf32> -> vector<2x128xf32>
    %cst_50 = arith.constant dense<0.000000e+00> : vector<2x128xf32>
    %271 = tpu.matmul %269, %1, %cst_50 {dimension_numbers = #tpu.dot_dimension_numbers<[1], [0], [0], [1], [0, 0, 1, 1], [], []>} : vector<2x32xf32>, vector<32x128xf32>, vector<2x128xf32> -> vector<2x128xf32>
    %272 = arith.addf %270, %271 : vector<2x128xf32>
    %273 = arith.addf %272, %6 : vector<2x128xf32>
    %274 = vector.extract_strided_slice %273 {offsets = [0, 0], sizes = [2, 96], strides = [1, 1]} : vector<2x128xf32> to vector<2x96xf32>
    %275 = arith.negf %274 : vector<2x96xf32>
    %276 = math.exp %275 : vector<2x96xf32>
    %cst_51 = arith.constant 1.000000e+00 : f32
    %277 = vector.broadcast %cst_51 : f32 to vector<2x96xf32>
    %278 = arith.addf %277, %276 : vector<2x96xf32>
    %279 = arith.divf %277, %278 : vector<2x96xf32>
    %280 = vector.extract_strided_slice %279 {offsets = [0, 0], sizes = [2, 32], strides = [1, 1]} : vector<2x96xf32> to vector<2x32xf32>
    %281 = vector.extract_strided_slice %279 {offsets = [0, 32], sizes = [2, 32], strides = [1, 1]} : vector<2x96xf32> to vector<2x32xf32>
    %282 = vector.extract_strided_slice %279 {offsets = [0, 64], sizes = [2, 32], strides = [1, 1]} : vector<2x96xf32> to vector<2x32xf32>
    %283 = vector.extract_strided_slice %273 {offsets = [0, 96], sizes = [2, 32], strides = [1, 1]} : vector<2x128xf32> to vector<2x32xf32>
    %284 = math.tanh %283 : vector<2x32xf32>
    %285 = arith.mulf %281, %248 : vector<2x32xf32>
    %286 = arith.mulf %280, %284 : vector<2x32xf32>
    %287 = arith.addf %285, %286 : vector<2x32xf32>
    %288 = math.tanh %287 : vector<2x32xf32>
    %289 = arith.mulf %282, %288 : vector<2x32xf32>
    %290 = vector.extract_strided_slice %12 {offsets = [14, 0], sizes = [2, 128], strides = [1, 1]} : vector<16x128xf32> to vector<2x128xf32>
    %cst_52 = arith.constant dense<0.000000e+00> : vector<2x128xf32>
    %291 = tpu.matmul %269, %2, %cst_52 {dimension_numbers = #tpu.dot_dimension_numbers<[1], [0], [0], [1], [0, 0, 1, 1], [], []>} : vector<2x32xf32>, vector<32x128xf32>, vector<2x128xf32> -> vector<2x128xf32>
    %292 = arith.addf %290, %291 : vector<2x128xf32>
    %293 = vector.extract_strided_slice %292 {offsets = [0, 0], sizes = [2, 96], strides = [1, 1]} : vector<2x128xf32> to vector<2x96xf32>
    %294 = arith.negf %293 : vector<2x96xf32>
    %295 = math.exp %294 : vector<2x96xf32>
    %cst_53 = arith.constant 1.000000e+00 : f32
    %296 = vector.broadcast %cst_53 : f32 to vector<2x96xf32>
    %297 = arith.addf %296, %295 : vector<2x96xf32>
    %298 = arith.divf %296, %297 : vector<2x96xf32>
    %299 = vector.extract_strided_slice %298 {offsets = [0, 0], sizes = [2, 32], strides = [1, 1]} : vector<2x96xf32> to vector<2x32xf32>
    %300 = vector.extract_strided_slice %298 {offsets = [0, 32], sizes = [2, 32], strides = [1, 1]} : vector<2x96xf32> to vector<2x32xf32>
    %301 = vector.extract_strided_slice %298 {offsets = [0, 64], sizes = [2, 32], strides = [1, 1]} : vector<2x96xf32> to vector<2x32xf32>
    %302 = vector.extract_strided_slice %292 {offsets = [0, 96], sizes = [2, 32], strides = [1, 1]} : vector<2x128xf32> to vector<2x32xf32>
    %303 = math.tanh %302 : vector<2x32xf32>
    %304 = arith.mulf %300, %267 : vector<2x32xf32>
    %305 = arith.mulf %299, %303 : vector<2x32xf32>
    %306 = arith.addf %304, %305 : vector<2x32xf32>
    %307 = math.tanh %306 : vector<2x32xf32>
    %308 = arith.mulf %301, %307 : vector<2x32xf32>
    %cst_54 = arith.constant dense<0.000000e+00> : vector<2x128xf32>
    %309 = tpu.matmul %289, %3, %cst_54 {dimension_numbers = #tpu.dot_dimension_numbers<[1], [0], [0], [1], [0, 0, 1, 1], [], []>} : vector<2x32xf32>, vector<32x128xf32>, vector<2x128xf32> -> vector<2x128xf32>
    %cst_55 = arith.constant dense<0.000000e+00> : vector<2x128xf32>
    %310 = tpu.matmul %308, %1, %cst_55 {dimension_numbers = #tpu.dot_dimension_numbers<[1], [0], [0], [1], [0, 0, 1, 1], [], []>} : vector<2x32xf32>, vector<32x128xf32>, vector<2x128xf32> -> vector<2x128xf32>
    %311 = arith.addf %309, %310 : vector<2x128xf32>
    %312 = arith.addf %311, %6 : vector<2x128xf32>
    %313 = vector.extract_strided_slice %312 {offsets = [0, 0], sizes = [2, 96], strides = [1, 1]} : vector<2x128xf32> to vector<2x96xf32>
    %314 = arith.negf %313 : vector<2x96xf32>
    %315 = math.exp %314 : vector<2x96xf32>
    %cst_56 = arith.constant 1.000000e+00 : f32
    %316 = vector.broadcast %cst_56 : f32 to vector<2x96xf32>
    %317 = arith.addf %316, %315 : vector<2x96xf32>
    %318 = arith.divf %316, %317 : vector<2x96xf32>
    %319 = vector.extract_strided_slice %318 {offsets = [0, 0], sizes = [2, 32], strides = [1, 1]} : vector<2x96xf32> to vector<2x32xf32>
    %320 = vector.extract_strided_slice %318 {offsets = [0, 32], sizes = [2, 32], strides = [1, 1]} : vector<2x96xf32> to vector<2x32xf32>
    %321 = vector.extract_strided_slice %318 {offsets = [0, 64], sizes = [2, 32], strides = [1, 1]} : vector<2x96xf32> to vector<2x32xf32>
    %322 = vector.extract_strided_slice %312 {offsets = [0, 96], sizes = [2, 32], strides = [1, 1]} : vector<2x128xf32> to vector<2x32xf32>
    %323 = math.tanh %322 : vector<2x32xf32>
    %324 = arith.mulf %320, %287 : vector<2x32xf32>
    %325 = arith.mulf %319, %323 : vector<2x32xf32>
    %326 = arith.addf %324, %325 : vector<2x32xf32>
    %327 = math.tanh %326 : vector<2x32xf32>
    %328 = arith.mulf %321, %327 : vector<2x32xf32>
    %c0_57 = arith.constant 0 : index
    %c0_58 = arith.constant 0 : index
    %329 = vector.load %arg7[%c0_57, %c0_58] : memref<32x4xf32, #tpu.memory_space<vmem>>, vector<32x4xf32>
    %cst_59 = arith.constant dense<0.000000e+00> : vector<2x4xf32>
    %330 = tpu.matmul %328, %329, %cst_59 {dimension_numbers = #tpu.dot_dimension_numbers<[1], [0], [0], [1], [0, 0, 1, 1], [], []>} : vector<2x32xf32>, vector<32x4xf32>, vector<2x4xf32> -> vector<2x4xf32>
    %c0_60 = arith.constant 0 : index
    %c0_61 = arith.constant 0 : index
    %331 = vector.load %arg8[%c0_60, %c0_61] : memref<1x4xf32, #tpu.memory_space<vmem>>, vector<1x4xf32>
    %332 = vector.broadcast %331 : vector<1x4xf32> to vector<2x4xf32>
    %333 = arith.addf %330, %332 : vector<2x4xf32>
    %c0_62 = arith.constant 0 : index
    %c0_63 = arith.constant 0 : index
    %334 = vector.load %arg9[%c0_62, %c0_63] : memref<2x4xf32, #tpu.memory_space<vmem>>, vector<2x4xf32>
    tpu.vector_store %arg9[%c0_62, %c0_63], %333 {strides = array<i32>} : memref<2x4xf32, #tpu.memory_space<vmem>>, vector<2x4xf32>,
    return
  }
}

</mosaic_0001>

<llo_original>
// kernel: tpu_custom_call.1
$region0: #{tpu_custom_call.1}
  #allocation0 [shape = 'u32[]', space=smem, size = 0x4, offset = 0x4, fixed_abs, tag = 'smem constant byte address 0x4 - core index']
  #allocation1 [shape = 'u32[72,128]{1,0:T(1,128)}', space=vmem, size = 0x9000, scoped, tag = 'internal scratch']
  %s0 = inlined_call_operand.hbm [shape: f32[16,16], index: 0, kind: input, shape index: {}]
  %s1 = inlined_call_operand.hbm [shape: f32[16,128], index: 1, kind: input, shape index: {}]
  %s2 = inlined_call_operand.vmem [shape: f32[32,128], index: 2, kind: input, shape index: {}]
  %s3 = inlined_call_operand.vmem [shape: f32[1,128], index: 3, kind: input, shape index: {}]
  %s4 = inlined_call_operand.hbm [shape: f32[32,128], index: 4, kind: input, shape index: {}]
  %s5 = inlined_call_operand.hbm [shape: f32[32,128], index: 5, kind: input, shape index: {}]
  %s6 = inlined_call_operand.vmem [shape: f32[1,128], index: 6, kind: input, shape index: {}]
  %s7 = inlined_call_operand.vmem [shape: f32[32,4], index: 7, kind: input, shape index: {}]
  %s8 = inlined_call_operand.vmem [shape: f32[1,4], index: 8, kind: input, shape index: {}]
  %s9 = inlined_call_operand.hbm [shape: f32[2,4], index: 9, kind: output, shape index: {}]
  %s10 = sld [smem:[#allocation0]]
  $region62: #{tpu_custom_call.1} parent=0
    _
  %s12 = ssub.s32 1, %s10
  %s13 = scalar_select 0, %s12, %s10
  $region1: #{tpu_custom_call.1} parent=0
    #allocation2 [shape = 'u8[8192]{0}', space=vmem, size = 0x2000, scoped, tag = 'input window, operand 0, single buffered']
    #allocation3 [shape = 's32[1]{0}', space=sflag, size = 0x4, scoped, tag = 'scoped memory for tpu_custom_call.1']
    #allocation4 [shape = 's32[1]{0}', space=sflag, size = 0x4, scoped, tag = 'scoped memory for tpu_custom_call.1']
    #allocation5 [shape = 'u8[8192]{0}', space=vmem, size = 0x2000, scoped, tag = 'input window, operand 1, single buffered']
    #allocation6 [shape = 's32[1]{0}', space=sflag, size = 0x4, scoped, tag = 'scoped memory for tpu_custom_call.1']
    #allocation7 [shape = 'u8[16384]{0}', space=vmem, size = 0x4000, scoped, tag = 'input window, operand 4, single buffered']
    #allocation8 [shape = 'u8[16384]{0}', space=vmem, size = 0x4000, scoped, tag = 'input window, operand 5, single buffered']
    #allocation9 [shape = 's32[1]{0}', space=sflag, size = 0x4, scoped, tag = 'scoped memory for tpu_custom_call.1']
    #allocation10 [shape = 'u8[1024]{0}', space=vmem, size = 0x400, scoped, tag = 'output window, operand 0, single buffered']
    %14 = vsyncpa [#allocation3], 0
    %15 = vsyncpa [#allocation6], 0
    %16 = vsyncpa [#allocation9], 0
    %17 = vsyncpa [#allocation4], 0
    // Predicated region
    $region2: #{tpu_custom_call.1} parent=1 // pred_check
      _
    $region3: #{tpu_custom_call.1} parent=1 // pred_check_branch
      %19 = sbr.rel (0) target = $region5
    $region4: #{tpu_custom_call.1} parent=1 // pred_region
      %21 = vsyncadd [#allocation3], 0
      %s22 = sshll.u32 %s0, 4
      %s23 = int_to_ptr.hbm [resolvable:$true] %s22
      %s24 = sshll.u32 [#allocation2], 4
      %s25 = int_to_ptr.vmem [resolvable:$true] %s24
      %30 = dma.hbm_to_vmem [thread:$0]  %s23, 256, %s25, [#allocation3], 128, 128, 8
    $region5: #{tpu_custom_call.1} parent=1 // pred_fallthru
      _
    // Predicated region
    $region6: #{tpu_custom_call.1} parent=1 // pred_check
      _
    $region7: #{tpu_custom_call.1} parent=1 // pred_check_branch
      %32 = sbr.rel (0) target = $region9
    $region8: #{tpu_custom_call.1} parent=1 // pred_region
      %34 = vsyncadd [#allocation6], 0
      %s35 = sshll.u32 %s1, 4
      %s36 = int_to_ptr.hbm [resolvable:$true] %s35
      %s37 = sshll.u32 [#allocation5], 4
      %s38 = int_to_ptr.vmem [resolvable:$true] %s37
      %43 = dma.hbm_to_vmem [thread:$0]  %s36, 256, %s38, [#allocation6], 128, 128, 8
    $region9: #{tpu_custom_call.1} parent=1 // pred_fallthru
      _
    // Predicated region
    $region10: #{tpu_custom_call.1} parent=1 // pred_check
      _
    $region11: #{tpu_custom_call.1} parent=1 // pred_check_branch
      %45 = sbr.rel (0) target = $region13
    $region12: #{tpu_custom_call.1} parent=1 // pred_region
      _
    $region13: #{tpu_custom_call.1} parent=1 // pred_fallthru
      _
    // Predicated region
    $region14: #{tpu_custom_call.1} parent=1 // pred_check
      _
    $region15: #{tpu_custom_call.1} parent=1 // pred_check_branch
      %47 = sbr.rel (0) target = $region17
    $region16: #{tpu_custom_call.1} parent=1 // pred_region
      _
    $region17: #{tpu_custom_call.1} parent=1 // pred_fallthru
      _
    // Predicated region
    $region18: #{tpu_custom_call.1} parent=1 // pred_check
      _
    $region19: #{tpu_custom_call.1} parent=1 // pred_check_branch
      %49 = sbr.rel (0) target = $region21
    $region20: #{tpu_custom_call.1} parent=1 // pred_region
      %51 = vsyncadd [#allocation6], 0
      %s52 = sshll.u32 %s4, 4
      %s53 = int_to_ptr.hbm [resolvable:$true] %s52
      %s54 = sshll.u32 [#allocation7], 4
      %s55 = int_to_ptr.vmem [resolvable:$true] %s54
      %60 = dma.hbm_to_vmem [thread:$0]  %s53, 512, %s55, [#allocation6], 128, 128, 8
    $region21: #{tpu_custom_call.1} parent=1 // pred_fallthru
      _
    // Predicated region
    $region22: #{tpu_custom_call.1} parent=1 // pred_check
      _
    $region23: #{tpu_custom_call.1} parent=1 // pred_check_branch
      %62 = sbr.rel (0) target = $region25
    $region24: #{tpu_custom_call.1} parent=1 // pred_region
      %64 = vsyncadd [#allocation9], 0
      %s65 = sshll.u32 %s5, 4
      %s66 = int_to_ptr.hbm [resolvable:$true] %s65
      %s67 = sshll.u32 [#allocation8], 4
      %s68 = int_to_ptr.vmem [resolvable:$true] %s67
      %73 = dma.hbm_to_vmem [thread:$0]  %s66, 512, %s68, [#allocation9], 128, 128, 8
    $region25: #{tpu_custom_call.1} parent=1 // pred_fallthru
      _
    // Predicated region
    $region26: #{tpu_custom_call.1} parent=1 // pred_check
      _
    $region27: #{tpu_custom_call.1} parent=1 // pred_check_branch
      %75 = sbr.rel (0) target = $region29
    $region28: #{tpu_custom_call.1} parent=1 // pred_region
      _
    $region29: #{tpu_custom_call.1} parent=1 // pred_fallthru
      _
    // Predicated region
    $region30: #{tpu_custom_call.1} parent=1 // pred_check
      _
    $region31: #{tpu_custom_call.1} parent=1 // pred_check_branch
      %77 = sbr.rel (0) target = $region33
    $region32: #{tpu_custom_call.1} parent=1 // pred_region
      _
    $region33: #{tpu_custom_call.1} parent=1 // pred_fallthru
      _
    // Predicated region
    $region34: #{tpu_custom_call.1} parent=1 // pred_check
      _
    $region35: #{tpu_custom_call.1} parent=1 // pred_check_branch
      %79 = sbr.rel (0) target = $region37
    $region36: #{tpu_custom_call.1} parent=1 // pred_region
      _
    $region37: #{tpu_custom_call.1} parent=1 // pred_fallthru
      _
    // Predicated region
    $region38: #{tpu_custom_call.1} parent=1 // pred_check
      _
    $region39: #{tpu_custom_call.1} parent=1 // pred_check_branch
      %81 = sbr.rel (0) target = $region41
    $region40: #{tpu_custom_call.1} parent=1 // pred_region
      %83 = dma.done [#allocation3], 256
    $region41: #{tpu_custom_call.1} parent=1 // pred_fallthru
      _
    // Predicated region
    $region42: #{tpu_custom_call.1} parent=1 // pred_check
      _
    $region43: #{tpu_custom_call.1} parent=1 // pred_check_branch
      %85 = sbr.rel (0) target = $region45
    $region44: #{tpu_custom_call.1} parent=1 // pred_region
      %87 = dma.done [#allocation6], 256
    $region45: #{tpu_custom_call.1} parent=1 // pred_fallthru
      _
    // Predicated region
    $region46: #{tpu_custom_call.1} parent=1 // pred_check
      _
    $region47: #{tpu_custom_call.1} parent=1 // pred_check_branch
      %89 = sbr.rel (0) target = $region49
    $region48: #{tpu_custom_call.1} parent=1 // pred_region
      %91 = dma.done [#allocation6], 512
    $region49: #{tpu_custom_call.1} parent=1 // pred_fallthru
      _
    // Predicated region
    $region50: #{tpu_custom_call.1} parent=1 // pred_check
      _
    $region51: #{tpu_custom_call.1} parent=1 // pred_check_branch
      %93 = sbr.rel (0) target = $region53
    $region52: #{tpu_custom_call.1} parent=1 // pred_region
      %95 = dma.done [#allocation9], 512
    $region53: #{tpu_custom_call.1} parent=1 // pred_fallthru
      _
    %v96 = vld [vmem:[#allocation5] sm:$0xff]
    %v97 = vld [vmem:[#allocation5 + $0x8] sm:$0xff]
    %v98 = vld [vmem:[#allocation7] sm:$0xff]
    %v99 = vld [vmem:[#allocation7 + $0x8] sm:$0xff]
    %v100 = vld [vmem:[#allocation7 + $0x10] sm:$0xff]
    %v101 = vld [vmem:[#allocation7 + $0x18] sm:$0xff]
    %v102 = vld [vmem:[%s2] sm:$0xff]
    %v103 = vld [vmem:[%s2 + $0x8] sm:$0xff]
    %v104 = vld [vmem:[%s2 + $0x10] sm:$0xff]
    %v105 = vld [vmem:[%s2 + $0x18] sm:$0xff]
    %v106 = vld [vmem:[#allocation8] sm:$0xff]
    %v107 = vld [vmem:[#allocation8 + $0x8] sm:$0xff]
    %v108 = vld [vmem:[#allocation8 + $0x10] sm:$0xff]
    %v109 = vld [vmem:[#allocation8 + $0x18] sm:$0xff]
    %v110 = vld [vmem:[%s6] sm:$0x1]
    %v112 = vperm.slane %v110, 0
    %v114 = vld [vmem:[#allocation2] sm:$0xff]
    %v115 = vld [vmem:[#allocation2 + $0x8] sm:$0xff]
    %v116 = vld [vmem:[%s3] sm:$0x1]
    %v118 = vperm.slane %v116, 0
    %vm120 = vcmask 130048
    %v122 = vsel %vm120, %v114, 0
    %v125 = vsel %vm120, %v115, 0
    %127 = vmatpush.msra.mxu0 0.0
    %128 = vmatpush.msra.mxu0 0.0
    %129 = vmatpush.msra.mxu0 0.0
    %130 = vmatpush.msra.mxu0 0.0
    %131 = vmatpush.msra.mxu0 0.0
    %132 = vmatpush.msra.mxu0 0.0
    %133 = vmatpush.msra.mxu0 0.0
    %134 = vmatpush.msra.mxu0 0.0
    %135 = vmatpush.msra.mxu0 0.0
    %136 = vmatpush.msra.mxu0 0.0
    %137 = vmatpush.msra.mxu0 0.0
    %138 = vmatpush.msra.mxu0 0.0
    %139 = vmatpush.msra.mxu0 0.0
    %140 = vmatpush.msra.mxu0 0.0
    %141 = vmatpush.msra.mxu0 %v97
    %142 = vmatpush.msra.mxu0 %v96
    %143 = vmatmul.f32.gmra.mxu0 %v122
    %v144 = vpop.f32.mrf.mxu0
    %v145 = vadd.f32 %v118, %v144
    %146 = vmatmul.f32.gmra.mxu0 %v125
    %v147 = vpop.f32.mrf.mxu0
    %v148 = vadd.f32 %v118, %v147
    %149 = vdwg.mxu0
    %vm150 = vcmask 261120
    %v152 = vsel %vm150, 0.0, 0
    %154 = vmatpush.msra.mxu0 0.0
    %155 = vmatpush.msra.mxu0 0.0
    %156 = vmatpush.msra.mxu0 0.0
    %157 = vmatpush.msra.mxu0 0.0
    %158 = vmatpush.msra.mxu0 0.0
    %159 = vmatpush.msra.mxu0 0.0
    %160 = vmatpush.msra.mxu0 0.0
    %161 = vmatpush.msra.mxu0 0.0
    %162 = vmatpush.msra.mxu0 0.0
    %163 = vmatpush.msra.mxu0 0.0
    %164 = vmatpush.msra.mxu0 0.0
    %165 = vmatpush.msra.mxu0 0.0
    %166 = vmatpush.msra.mxu0 %v105
    %167 = vmatpush.msra.mxu0 %v104
    %168 = vmatpush.msra.mxu0 %v103
    %169 = vmatpush.msra.mxu0 %v102
    %170 = vmatmul.f32.gmra.mxu0 %v152
    %v171 = vpop.f32.mrf.mxu0
    %v172 = vadd.f32 0.0, %v171
    %173 = vdwg.mxu0
    %v174 = vadd.f32 %v145, %v172
    %v175 = vxor.u32 %v174, 2147483648
    %v176 = vmul.f32 %v175, 1.442695
    %v177 = vpow.pop %v176
    %v178 = vadd.f32 %v177, 1.0
    %v179 = vrcp.pop %v178
    %v180 = vmul.f32 %v178, %v179
    %v181 = vsub.f32 1.0, %v180
    %v182 = vmul.f32 %v179, %v181
    %v183 = vadd.f32 %v179, %v182
    %vm184 = vweird.f32 %v178
    %vm185 = vweird.f32 %v179
    %vm186 = vmor %vm184, %vm185
    %v187 = vsel %vm186, %v179, %v183
    %v188 = vand.u32 2147483647, %v178
    %vm189 = vcmp.eq.f32.partialorder %v188, 8.507059e+37
    %v190 = vand.u32 %v178, 2147483648
    %v191 = vor.u32 1.1754944e-38, %v190
    %v192 = vsel %vm189, %v191, %v187
    %v193 = vmul.f32 1.0, %v192
    %v194 = vtanh.pop %v174
    %v195 = vmul.f32 %v193, 0.0
    %197 = vrot.lane.b32.xlu0 %v194, 32
    %v198 = vpop.permute.xlu0 %197
    %v200 = vmul.f32 %v193, %v198
    %202 = vrot.lane.b32.xlu0 %v200, 32
    %v203 = vpop.permute.xlu0 %202
    %v205 = vadd.f32 %v195, %v203
    %v206 = vtanh.pop %v205
    %208 = vrot.lane.b32.xlu0 %v206, 32
    %v209 = vpop.permute.xlu0 %208
    %v211 = vmul.f32 %v193, %v209
    %213 = vrot.lane.b32.xlu0 %v211, 64
    %v214 = vpop.permute.xlu0 %213
    %v215 = vsel %vm150, %v214, 0
    %217 = vmatpush.msra.mxu0 0.0
    %218 = vmatpush.msra.mxu0 0.0
    %219 = vmatpush.msra.mxu0 0.0
    %220 = vmatpush.msra.mxu0 0.0
    %221 = vmatpush.msra.mxu0 0.0
    %222 = vmatpush.msra.mxu0 0.0
    %223 = vmatpush.msra.mxu0 0.0
    %224 = vmatpush.msra.mxu0 0.0
    %225 = vmatpush.msra.mxu0 0.0
    %226 = vmatpush.msra.mxu0 0.0
    %227 = vmatpush.msra.mxu0 0.0
    %228 = vmatpush.msra.mxu0 0.0
    %229 = vmatpush.msra.mxu0 %v101
    %230 = vmatpush.msra.mxu0 %v100
    %231 = vmatpush.msra.mxu0 %v99
    %232 = vmatpush.msra.mxu0 %v98
    %233 = vmatmul.f32.gmra.mxu0 %v215
    %v234 = vpop.f32.mrf.mxu0
    %v235 = vadd.f32 0.0, %v234
    %236 = vdwg.mxu0
    %237 = vmatpush.msra.mxu0 0.0
    %238 = vmatpush.msra.mxu0 0.0
    %239 = vmatpush.msra.mxu0 0.0
    %240 = vmatpush.msra.mxu0 0.0
    %241 = vmatpush.msra.mxu0 0.0
    %242 = vmatpush.msra.mxu0 0.0
    %243 = vmatpush.msra.mxu0 0.0
    %244 = vmatpush.msra.mxu0 0.0
    %245 = vmatpush.msra.mxu0 0.0
    %246 = vmatpush.msra.mxu0 0.0
    %247 = vmatpush.msra.mxu0 0.0
    %248 = vmatpush.msra.mxu0 0.0
    %249 = vmatpush.msra.mxu0 %v109
    %250 = vmatpush.msra.mxu0 %v108
    %251 = vmatpush.msra.mxu0 %v107
    %252 = vmatpush.msra.mxu0 %v106
    %253 = vmatmul.f32.gmra.mxu0 %v152
    %v254 = vpop.f32.mrf.mxu0
    %v255 = vadd.f32 %v235, %v254
    %256 = vdwg.mxu0
    %v257 = vadd.f32 %v255, %v112
    %v258 = vxor.u32 %v257, 2147483648
    %v259 = vmul.f32 %v258, 1.442695
    %v260 = vpow.pop %v259
    %v261 = vadd.f32 %v260, 1.0
    %v262 = vrcp.pop %v261
    %v263 = vmul.f32 %v261, %v262
    %v264 = vsub.f32 1.0, %v263
    %v265 = vmul.f32 %v262, %v264
    %v266 = vadd.f32 %v262, %v265
    %vm267 = vweird.f32 %v261
    %vm268 = vweird.f32 %v262
    %vm269 = vmor %vm267, %vm268
    %v270 = vsel %vm269, %v262, %v266
    %v271 = vand.u32 2147483647, %v261
    %vm272 = vcmp.eq.f32.partialorder %v271, 8.507059e+37
    %v273 = vand.u32 %v261, 2147483648
    %v274 = vor.u32 1.1754944e-38, %v273
    %v275 = vsel %vm272, %v274, %v270
    %v276 = vmul.f32 1.0, %v275
    %v277 = vtanh.pop %v257
    %v278 = vmul.f32 %v276, 0.0
    %280 = vrot.lane.b32.xlu0 %v277, 32
    %v281 = vpop.permute.xlu0 %280
    %v283 = vmul.f32 %v276, %v281
    %285 = vrot.lane.b32.xlu0 %v283, 32
    %v286 = vpop.permute.xlu0 %285
    %v288 = vadd.f32 %v278, %v286
    %v289 = vtanh.pop %v288
    %291 = vrot.lane.b32.xlu0 %v289, 32
    %v292 = vpop.permute.xlu0 %291
    %v294 = vmul.f32 %v276, %v292
    %295 = vmatpush.msra.mxu0 0.0
    %296 = vmatpush.msra.mxu0 0.0
    %297 = vmatpush.msra.mxu0 0.0
    %298 = vmatpush.msra.mxu0 0.0
    %299 = vmatpush.msra.mxu0 0.0
    %300 = vmatpush.msra.mxu0 0.0
    %301 = vmatpush.msra.mxu0 0.0
    %302 = vmatpush.msra.mxu0 0.0
    %303 = vmatpush.msra.mxu0 0.0
    %304 = vmatpush.msra.mxu0 0.0
    %305 = vmatpush.msra.mxu0 0.0
    %306 = vmatpush.msra.mxu0 0.0
    %307 = vmatpush.msra.mxu0 %v105
    %308 = vmatpush.msra.mxu0 %v104
    %309 = vmatpush.msra.mxu0 %v103
    %310 = vmatpush.msra.mxu0 %v102
    %311 = vmatmul.f32.gmra.mxu0 %v215
    %v312 = vpop.f32.mrf.mxu0
    %v313 = vadd.f32 0.0, %v312
    %314 = vdwg.mxu0
    %v316 = vrot.slane %v313, 6
    %v318 = vadd.f32 %v145, %v316
    %v319 = vxor.u32 %v318, 2147483648
    %v320 = vmul.f32 %v319, 1.442695
    %v321 = vpow.pop %v320
    %v322 = vadd.f32 %v321, 1.0
    %v323 = vrcp.pop %v322
    %v324 = vmul.f32 %v322, %v323
    %v325 = vsub.f32 1.0, %v324
    %v326 = vmul.f32 %v323, %v325
    %v327 = vadd.f32 %v323, %v326
    %vm328 = vweird.f32 %v322
    %vm329 = vweird.f32 %v323
    %vm330 = vmor %vm328, %vm329
    %v331 = vsel %vm330, %v323, %v327
    %v332 = vand.u32 2147483647, %v322
    %vm333 = vcmp.eq.f32.partialorder %v332, 8.507059e+37
    %v334 = vand.u32 %v322, 2147483648
    %v335 = vor.u32 1.1754944e-38, %v334
    %v336 = vsel %vm333, %v335, %v331
    %v337 = vmul.f32 1.0, %v336
    %v338 = vtanh.pop %v318
    %v340 = vrot.slane %v205, 6
    %v342 = vmul.f32 %v337, %v340
    %344 = vrot.lane.b32.xlu0 %v338, 32
    %v345 = vpop.permute.xlu0 %344
    %v347 = vmul.f32 %v337, %v345
    %349 = vrot.lane.b32.xlu0 %v347, 32
    %v350 = vpop.permute.xlu0 %349
    %v352 = vadd.f32 %v342, %v350
    %v353 = vtanh.pop %v352
    %355 = vrot.lane.b32.xlu0 %v353, 32
    %v356 = vpop.permute.xlu0 %355
    %v358 = vmul.f32 %v337, %v356
    %v360 = vrot.slane %v358, 2
    %361 = vrot.lane.b32.xlu0 %v360, 64
    %v362 = vpop.permute.xlu0 %361
    %v363 = vsel %vm150, %v362, 0
    %365 = vmatpush.msra.mxu0 0.0
    %366 = vmatpush.msra.mxu0 0.0
    %367 = vmatpush.msra.mxu0 0.0
    %368 = vmatpush.msra.mxu0 0.0
    %369 = vmatpush.msra.mxu0 0.0
    %370 = vmatpush.msra.mxu0 0.0
    %371 = vmatpush.msra.mxu0 0.0
    %372 = vmatpush.msra.mxu0 0.0
    %373 = vmatpush.msra.mxu0 0.0
    %374 = vmatpush.msra.mxu0 0.0
    %375 = vmatpush.msra.mxu0 0.0
    %376 = vmatpush.msra.mxu0 0.0
    %377 = vmatpush.msra.mxu0 %v101
    %378 = vmatpush.msra.mxu0 %v100
    %379 = vmatpush.msra.mxu0 %v99
    %380 = vmatpush.msra.mxu0 %v98
    %381 = vmatmul.f32.gmra.mxu0 %v363
    %v382 = vpop.f32.mrf.mxu0
    %v383 = vadd.f32 0.0, %v382
    %384 = vdwg.mxu0
    %386 = vrot.lane.b32.xlu0 %v294, 64
    %v387 = vpop.permute.xlu0 %386
    %v388 = vsel %vm150, %v387, 0
    %390 = vmatpush.msra.mxu0 0.0
    %391 = vmatpush.msra.mxu0 0.0
    %392 = vmatpush.msra.mxu0 0.0
    %393 = vmatpush.msra.mxu0 0.0
    %394 = vmatpush.msra.mxu0 0.0
    %395 = vmatpush.msra.mxu0 0.0
    %396 = vmatpush.msra.mxu0 0.0
    %397 = vmatpush.msra.mxu0 0.0
    %398 = vmatpush.msra.mxu0 0.0
    %399 = vmatpush.msra.mxu0 0.0
    %400 = vmatpush.msra.mxu0 0.0
    %401 = vmatpush.msra.mxu0 0.0
    %402 = vmatpush.msra.mxu0 %v109
    %403 = vmatpush.msra.mxu0 %v108
    %404 = vmatpush.msra.mxu0 %v107
    %405 = vmatpush.msra.mxu0 %v106
    %406 = vmatmul.f32.gmra.mxu0 %v388
    %v407 = vpop.f32.mrf.mxu0
    %v408 = vadd.f32 %v383, %v407
    %409 = vdwg.mxu0
    %v410 = vadd.f32 %v408, %v112
    %v411 = vxor.u32 %v410, 2147483648
    %v412 = vmul.f32 %v411, 1.442695
    %v413 = vpow.pop %v412
    %v414 = vadd.f32 %v413, 1.0
    %v415 = vrcp.pop %v414
    %v416 = vmul.f32 %v414, %v415
    %v417 = vsub.f32 1.0, %v416
    %v418 = vmul.f32 %v415, %v417
    %v419 = vadd.f32 %v415, %v418
    %vm420 = vweird.f32 %v414
    %vm421 = vweird.f32 %v415
    %vm422 = vmor %vm420, %vm421
    %v423 = vsel %vm422, %v415, %v419
    %v424 = vand.u32 2147483647, %v414
    %vm425 = vcmp.eq.f32.partialorder %v424, 8.507059e+37
    %v426 = vand.u32 %v414, 2147483648
    %v427 = vor.u32 1.1754944e-38, %v426
    %v428 = vsel %vm425, %v427, %v423
    %v429 = vmul.f32 1.0, %v428
    %v430 = vtanh.pop %v410
    %v431 = vmul.f32 %v429, %v288
    %433 = vrot.lane.b32.xlu0 %v430, 32
    %v434 = vpop.permute.xlu0 %433
    %v436 = vmul.f32 %v429, %v434
    %438 = vrot.lane.b32.xlu0 %v436, 32
    %v439 = vpop.permute.xlu0 %438
    %v441 = vadd.f32 %v431, %v439
    %v442 = vtanh.pop %v441
    %444 = vrot.lane.b32.xlu0 %v442, 32
    %v445 = vpop.permute.xlu0 %444
    %v447 = vmul.f32 %v429, %v445
    %448 = vmatpush.msra.mxu0 0.0
    %449 = vmatpush.msra.mxu0 0.0
    %450 = vmatpush.msra.mxu0 0.0
    %451 = vmatpush.msra.mxu0 0.0
    %452 = vmatpush.msra.mxu0 0.0
    %453 = vmatpush.msra.mxu0 0.0
    %454 = vmatpush.msra.mxu0 0.0
    %455 = vmatpush.msra.mxu0 0.0
    %456 = vmatpush.msra.mxu0 0.0
    %457 = vmatpush.msra.mxu0 0.0
    %458 = vmatpush.msra.mxu0 0.0
    %459 = vmatpush.msra.mxu0 0.0
    %460 = vmatpush.msra.mxu0 %v105
    %461 = vmatpush.msra.mxu0 %v104
    %462 = vmatpush.msra.mxu0 %v103
    %463 = vmatpush.msra.mxu0 %v102
    %464 = vmatmul.f32.gmra.mxu0 %v363
    %v465 = vpop.f32.mrf.mxu0
    %v466 = vadd.f32 0.0, %v465
    %467 = vdwg.mxu0
    %v469 = vrot.slane %v466, 4
    %v471 = vadd.f32 %v145, %v469
    %v472 = vxor.u32 %v471, 2147483648
    %v473 = vmul.f32 %v472, 1.442695
    %v474 = vpow.pop %v473
    %v475 = vadd.f32 %v474, 1.0
    %v476 = vrcp.pop %v475
    %v477 = vmul.f32 %v475, %v476
    %v478 = vsub.f32 1.0, %v477
    %v479 = vmul.f32 %v476, %v478
    %v480 = vadd.f32 %v476, %v479
    %vm481 = vweird.f32 %v475
    %vm482 = vweird.f32 %v476
    %vm483 = vmor %vm481, %vm482
    %v484 = vsel %vm483, %v476, %v480
    %v485 = vand.u32 2147483647, %v475
    %vm486 = vcmp.eq.f32.partialorder %v485, 8.507059e+37
    %v487 = vand.u32 %v475, 2147483648
    %v488 = vor.u32 1.1754944e-38, %v487
    %v489 = vsel %vm486, %v488, %v484
    %v490 = vmul.f32 1.0, %v489
    %v491 = vtanh.pop %v471
    %v493 = vrot.slane %v352, 6
    %v495 = vmul.f32 %v490, %v493
    %497 = vrot.lane.b32.xlu0 %v491, 32
    %v498 = vpop.permute.xlu0 %497
    %v500 = vmul.f32 %v490, %v498
    %502 = vrot.lane.b32.xlu0 %v500, 32
    %v503 = vpop.permute.xlu0 %502
    %v505 = vadd.f32 %v495, %v503
    %v506 = vtanh.pop %v505
    %508 = vrot.lane.b32.xlu0 %v506, 32
    %v509 = vpop.permute.xlu0 %508
    %v511 = vmul.f32 %v490, %v509
    %v513 = vrot.slane %v511, 4
    %514 = vrot.lane.b32.xlu0 %v513, 64
    %v515 = vpop.permute.xlu0 %514
    %v516 = vsel %vm150, %v515, 0
    %518 = vmatpush.msra.mxu0 0.0
    %519 = vmatpush.msra.mxu0 0.0
    %520 = vmatpush.msra.mxu0 0.0
    %521 = vmatpush.msra.mxu0 0.0
    %522 = vmatpush.msra.mxu0 0.0
    %523 = vmatpush.msra.mxu0 0.0
    %524 = vmatpush.msra.mxu0 0.0
    %525 = vmatpush.msra.mxu0 0.0
    %526 = vmatpush.msra.mxu0 0.0
    %527 = vmatpush.msra.mxu0 0.0
    %528 = vmatpush.msra.mxu0 0.0
    %529 = vmatpush.msra.mxu0 0.0
    %530 = vmatpush.msra.mxu0 %v101
    %531 = vmatpush.msra.mxu0 %v100
    %532 = vmatpush.msra.mxu0 %v99
    %533 = vmatpush.msra.mxu0 %v98
    %534 = vmatmul.f32.gmra.mxu0 %v516
    %v535 = vpop.f32.mrf.mxu0
    %v536 = vadd.f32 0.0, %v535
    %537 = vdwg.mxu0
    %539 = vrot.lane.b32.xlu0 %v447, 64
    %v540 = vpop.permute.xlu0 %539
    %v541 = vsel %vm150, %v540, 0
    %543 = vmatpush.msra.mxu0 0.0
    %544 = vmatpush.msra.mxu0 0.0
    %545 = vmatpush.msra.mxu0 0.0
    %546 = vmatpush.msra.mxu0 0.0
    %547 = vmatpush.msra.mxu0 0.0
    %548 = vmatpush.msra.mxu0 0.0
    %549 = vmatpush.msra.mxu0 0.0
    %550 = vmatpush.msra.mxu0 0.0
    %551 = vmatpush.msra.mxu0 0.0
    %552 = vmatpush.msra.mxu0 0.0
    %553 = vmatpush.msra.mxu0 0.0
    %554 = vmatpush.msra.mxu0 0.0
    %555 = vmatpush.msra.mxu0 %v109
    %556 = vmatpush.msra.mxu0 %v108
    %557 = vmatpush.msra.mxu0 %v107
    %558 = vmatpush.msra.mxu0 %v106
    %559 = vmatmul.f32.gmra.mxu0 %v541
    %v560 = vpop.f32.mrf.mxu0
    %v561 = vadd.f32 %v536, %v560
    %562 = vdwg.mxu0
    %v563 = vadd.f32 %v561, %v112
    %v564 = vxor.u32 %v563, 2147483648
    %v565 = vmul.f32 %v564, 1.442695
    %v566 = vpow.pop %v565
    %v567 = vadd.f32 %v566, 1.0
    %v568 = vrcp.pop %v567
    %v569 = vmul.f32 %v567, %v568
    %v570 = vsub.f32 1.0, %v569
    %v571 = vmul.f32 %v568, %v570
    %v572 = vadd.f32 %v568, %v571
    %vm573 = vweird.f32 %v567
    %vm574 = vweird.f32 %v568
    %vm575 = vmor %vm573, %vm574
    %v576 = vsel %vm575, %v568, %v572
    %v577 = vand.u32 2147483647, %v567
    %vm578 = vcmp.eq.f32.partialorder %v577, 8.507059e+37
    %v579 = vand.u32 %v567, 2147483648
    %v580 = vor.u32 1.1754944e-38, %v579
    %v581 = vsel %vm578, %v580, %v576
    %v582 = vmul.f32 1.0, %v581
    %v583 = vtanh.pop %v563
    %v584 = vmul.f32 %v582, %v441
    %586 = vrot.lane.b32.xlu0 %v583, 32
    %v587 = vpop.permute.xlu0 %586
    %v589 = vmul.f32 %v582, %v587
    %591 = vrot.lane.b32.xlu0 %v589, 32
    %v592 = vpop.permute.xlu0 %591
    %v594 = vadd.f32 %v584, %v592
    %v595 = vtanh.pop %v594
    %597 = vrot.lane.b32.xlu0 %v595, 32
    %v598 = vpop.permute.xlu0 %597
    %v600 = vmul.f32 %v582, %v598
    %601 = vmatpush.msra.mxu0 0.0
    %602 = vmatpush.msra.mxu0 0.0
    %603 = vmatpush.msra.mxu0 0.0
    %604 = vmatpush.msra.mxu0 0.0
    %605 = vmatpush.msra.mxu0 0.0
    %606 = vmatpush.msra.mxu0 0.0
    %607 = vmatpush.msra.mxu0 0.0
    %608 = vmatpush.msra.mxu0 0.0
    %609 = vmatpush.msra.mxu0 0.0
    %610 = vmatpush.msra.mxu0 0.0
    %611 = vmatpush.msra.mxu0 0.0
    %612 = vmatpush.msra.mxu0 0.0
    %613 = vmatpush.msra.mxu0 %v105
    %614 = vmatpush.msra.mxu0 %v104
    %615 = vmatpush.msra.mxu0 %v103
    %616 = vmatpush.msra.mxu0 %v102
    %617 = vmatmul.f32.gmra.mxu0 %v516
    %v618 = vpop.f32.mrf.mxu0
    %v619 = vadd.f32 0.0, %v618
    %620 = vdwg.mxu0
    %v622 = vrot.slane %v619, 2
    %v624 = vadd.f32 %v145, %v622
    %v625 = vxor.u32 %v624, 2147483648
    %v626 = vmul.f32 %v625, 1.442695
    %v627 = vpow.pop %v626
    %v628 = vadd.f32 %v627, 1.0
    %v629 = vrcp.pop %v628
    %v630 = vmul.f32 %v628, %v629
    %v631 = vsub.f32 1.0, %v630
    %v632 = vmul.f32 %v629, %v631
    %v633 = vadd.f32 %v629, %v632
    %vm634 = vweird.f32 %v628
    %vm635 = vweird.f32 %v629
    %vm636 = vmor %vm634, %vm635
    %v637 = vsel %vm636, %v629, %v633
    %v638 = vand.u32 2147483647, %v628
    %vm639 = vcmp.eq.f32.partialorder %v638, 8.507059e+37
    %v640 = vand.u32 %v628, 2147483648
    %v641 = vor.u32 1.1754944e-38, %v640
    %v642 = vsel %vm639, %v641, %v637
    %v643 = vmul.f32 1.0, %v642
    %v644 = vtanh.pop %v624
    %v646 = vrot.slane %v505, 6
    %v648 = vmul.f32 %v643, %v646
    %650 = vrot.lane.b32.xlu0 %v644, 32
    %v651 = vpop.permute.xlu0 %650
    %v653 = vmul.f32 %v643, %v651
    %655 = vrot.lane.b32.xlu0 %v653, 32
    %v656 = vpop.permute.xlu0 %655
    %v658 = vadd.f32 %v648, %v656
    %v659 = vtanh.pop %v658
    %661 = vrot.lane.b32.xlu0 %v659, 32
    %v662 = vpop.permute.xlu0 %661
    %v664 = vmul.f32 %v643, %v662
    %v666 = vrot.slane %v664, 6
    %667 = vrot.lane.b32.xlu0 %v666, 64
    %v668 = vpop.permute.xlu0 %667
    %v669 = vsel %vm150, %v668, 0
    %671 = vmatpush.msra.mxu0 0.0
    %672 = vmatpush.msra.mxu0 0.0
    %673 = vmatpush.msra.mxu0 0.0
    %674 = vmatpush.msra.mxu0 0.0
    %675 = vmatpush.msra.mxu0 0.0
    %676 = vmatpush.msra.mxu0 0.0
    %677 = vmatpush.msra.mxu0 0.0
    %678 = vmatpush.msra.mxu0 0.0
    %679 = vmatpush.msra.mxu0 0.0
    %680 = vmatpush.msra.mxu0 0.0
    %681 = vmatpush.msra.mxu0 0.0
    %682 = vmatpush.msra.mxu0 0.0
    %683 = vmatpush.msra.mxu0 %v101
    %684 = vmatpush.msra.mxu0 %v100
    %685 = vmatpush.msra.mxu0 %v99
    %686 = vmatpush.msra.mxu0 %v98
    %687 = vmatmul.f32.gmra.mxu0 %v669
    %v688 = vpop.f32.mrf.mxu0
    %v689 = vadd.f32 0.0, %v688
    %690 = vdwg.mxu0
    %692 = vrot.lane.b32.xlu0 %v600, 64
    %v693 = vpop.permute.xlu0 %692
    %v694 = vsel %vm150, %v693, 0
    %696 = vmatpush.msra.mxu0 0.0
    %697 = vmatpush.msra.mxu0 0.0
    %698 = vmatpush.msra.mxu0 0.0
    %699 = vmatpush.msra.mxu0 0.0
    %700 = vmatpush.msra.mxu0 0.0
    %701 = vmatpush.msra.mxu0 0.0
    %702 = vmatpush.msra.mxu0 0.0
    %703 = vmatpush.msra.mxu0 0.0
    %704 = vmatpush.msra.mxu0 0.0
    %705 = vmatpush.msra.mxu0 0.0
    %706 = vmatpush.msra.mxu0 0.0
    %707 = vmatpush.msra.mxu0 0.0
    %708 = vmatpush.msra.mxu0 %v109
    %709 = vmatpush.msra.mxu0 %v108
    %710 = vmatpush.msra.mxu0 %v107
    %711 = vmatpush.msra.mxu0 %v106
    %712 = vmatmul.f32.gmra.mxu0 %v694
    %v713 = vpop.f32.mrf.mxu0
    %v714 = vadd.f32 %v689, %v713
    %715 = vdwg.mxu0
    %v716 = vadd.f32 %v714, %v112
    %v717 = vxor.u32 %v716, 2147483648
    %v718 = vmul.f32 %v717, 1.442695
    %v719 = vpow.pop %v718
    %v720 = vadd.f32 %v719, 1.0
    %v721 = vrcp.pop %v720
    %v722 = vmul.f32 %v720, %v721
    %v723 = vsub.f32 1.0, %v722
    %v724 = vmul.f32 %v721, %v723
    %v725 = vadd.f32 %v721, %v724
    %vm726 = vweird.f32 %v720
    %vm727 = vweird.f32 %v721
    %vm728 = vmor %vm726, %vm727
    %v729 = vsel %vm728, %v721, %v725
    %v730 = vand.u32 2147483647, %v720
    %vm731 = vcmp.eq.f32.partialorder %v730, 8.507059e+37
    %v732 = vand.u32 %v720, 2147483648
    %v733 = vor.u32 1.1754944e-38, %v732
    %v734 = vsel %vm731, %v733, %v729
    %v735 = vmul.f32 1.0, %v734
    %v736 = vtanh.pop %v716
    %v737 = vmul.f32 %v735, %v594
    %739 = vrot.lane.b32.xlu0 %v736, 32
    %v740 = vpop.permute.xlu0 %739
    %v742 = vmul.f32 %v735, %v740
    %744 = vrot.lane.b32.xlu0 %v742, 32
    %v745 = vpop.permute.xlu0 %744
    %v747 = vadd.f32 %v737, %v745
    %v748 = vtanh.pop %v747
    %750 = vrot.lane.b32.xlu0 %v748, 32
    %v751 = vpop.permute.xlu0 %750
    %v753 = vmul.f32 %v735, %v751
    %754 = vmatpush.msra.mxu0 0.0
    %755 = vmatpush.msra.mxu0 0.0
    %756 = vmatpush.msra.mxu0 0.0
    %757 = vmatpush.msra.mxu0 0.0
    %758 = vmatpush.msra.mxu0 0.0
    %759 = vmatpush.msra.mxu0 0.0
    %760 = vmatpush.msra.mxu0 0.0
    %761 = vmatpush.msra.mxu0 0.0
    %762 = vmatpush.msra.mxu0 0.0
    %763 = vmatpush.msra.mxu0 0.0
    %764 = vmatpush.msra.mxu0 0.0
    %765 = vmatpush.msra.mxu0 0.0
    %766 = vmatpush.msra.mxu0 %v105
    %767 = vmatpush.msra.mxu0 %v104
    %768 = vmatpush.msra.mxu0 %v103
    %769 = vmatpush.msra.mxu0 %v102
    %770 = vmatmul.f32.gmra.mxu0 %v669
    %v771 = vpop.f32.mrf.mxu0
    %v772 = vadd.f32 0.0, %v771
    %773 = vdwg.mxu0
    %v774 = vadd.f32 %v148, %v772
    %v775 = vxor.u32 %v774, 2147483648
    %v776 = vmul.f32 %v775, 1.442695
    %v777 = vpow.pop %v776
    %v778 = vadd.f32 %v777, 1.0
    %v779 = vrcp.pop %v778
    %v780 = vmul.f32 %v778, %v779
    %v781 = vsub.f32 1.0, %v780
    %v782 = vmul.f32 %v779, %v781
    %v783 = vadd.f32 %v779, %v782
    %vm784 = vweird.f32 %v778
    %vm785 = vweird.f32 %v779
    %vm786 = vmor %vm784, %vm785
    %v787 = vsel %vm786, %v779, %v783
    %v788 = vand.u32 2147483647, %v778
    %vm789 = vcmp.eq.f32.partialorder %v788, 8.507059e+37
    %v790 = vand.u32 %v778, 2147483648
    %v791 = vor.u32 1.1754944e-38, %v790
    %v792 = vsel %vm789, %v791, %v787
    %v793 = vmul.f32 1.0, %v792
    %v794 = vtanh.pop %v774
    %v796 = vrot.slane %v658, 6
    %v798 = vmul.f32 %v793, %v796
    %800 = vrot.lane.b32.xlu0 %v794, 32
    %v801 = vpop.permute.xlu0 %800
    %v803 = vmul.f32 %v793, %v801
    %805 = vrot.lane.b32.xlu0 %v803, 32
    %v806 = vpop.permute.xlu0 %805
    %v808 = vadd.f32 %v798, %v806
    %v809 = vtanh.pop %v808
    %811 = vrot.lane.b32.xlu0 %v809, 32
    %v812 = vpop.permute.xlu0 %811
    %v814 = vmul.f32 %v793, %v812
    %816 = vrot.lane.b32.xlu0 %v814, 64
    %v817 = vpop.permute.xlu0 %816
    %v818 = vsel %vm150, %v817, 0
    %820 = vmatpush.msra.mxu0 0.0
    %821 = vmatpush.msra.mxu0 0.0
    %822 = vmatpush.msra.mxu0 0.0
    %823 = vmatpush.msra.mxu0 0.0
    %824 = vmatpush.msra.mxu0 0.0
    %825 = vmatpush.msra.mxu0 0.0
    %826 = vmatpush.msra.mxu0 0.0
    %827 = vmatpush.msra.mxu0 0.0
    %828 = vmatpush.msra.mxu0 0.0
    %829 = vmatpush.msra.mxu0 0.0
    %830 = vmatpush.msra.mxu0 0.0
    %831 = vmatpush.msra.mxu0 0.0
    %832 = vmatpush.msra.mxu0 %v101
    %833 = vmatpush.msra.mxu0 %v100
    %834 = vmatpush.msra.mxu0 %v99
    %835 = vmatpush.msra.mxu0 %v98
    %836 = vmatmul.f32.gmra.mxu0 %v818
    %v837 = vpop.f32.mrf.mxu0
    %v838 = vadd.f32 0.0, %v837
    %839 = vdwg.mxu0
    %841 = vrot.lane.b32.xlu0 %v753, 64
    %v842 = vpop.permute.xlu0 %841
    %v843 = vsel %vm150, %v842, 0
    %845 = vmatpush.msra.mxu0 0.0
    %846 = vmatpush.msra.mxu0 0.0
    %847 = vmatpush.msra.mxu0 0.0
    %848 = vmatpush.msra.mxu0 0.0
    %849 = vmatpush.msra.mxu0 0.0
    %850 = vmatpush.msra.mxu0 0.0
    %851 = vmatpush.msra.mxu0 0.0
    %852 = vmatpush.msra.mxu0 0.0
    %853 = vmatpush.msra.mxu0 0.0
    %854 = vmatpush.msra.mxu0 0.0
    %855 = vmatpush.msra.mxu0 0.0
    %856 = vmatpush.msra.mxu0 0.0
    %857 = vmatpush.msra.mxu0 %v109
    %858 = vmatpush.msra.mxu0 %v108
    %859 = vmatpush.msra.mxu0 %v107
    %860 = vmatpush.msra.mxu0 %v106
    %861 = vmatmul.f32.gmra.mxu0 %v843
    %v862 = vpop.f32.mrf.mxu0
    %v863 = vadd.f32 %v838, %v862
    %864 = vdwg.mxu0
    %v865 = vadd.f32 %v863, %v112
    %v866 = vxor.u32 %v865, 2147483648
    %v867 = vmul.f32 %v866, 1.442695
    %v868 = vpow.pop %v867
    %v869 = vadd.f32 %v868, 1.0
    %v870 = vrcp.pop %v869
    %v871 = vmul.f32 %v869, %v870
    %v872 = vsub.f32 1.0, %v871
    %v873 = vmul.f32 %v870, %v872
    %v874 = vadd.f32 %v870, %v873
    %vm875 = vweird.f32 %v869
    %vm876 = vweird.f32 %v870
    %vm877 = vmor %vm875, %vm876
    %v878 = vsel %vm877, %v870, %v874
    %v879 = vand.u32 2147483647, %v869
    %vm880 = vcmp.eq.f32.partialorder %v879, 8.507059e+37
    %v881 = vand.u32 %v869, 2147483648
    %v882 = vor.u32 1.1754944e-38, %v881
    %v883 = vsel %vm880, %v882, %v878
    %v884 = vmul.f32 1.0, %v883
    %v885 = vtanh.pop %v865
    %v886 = vmul.f32 %v884, %v747
    %888 = vrot.lane.b32.xlu0 %v885, 32
    %v889 = vpop.permute.xlu0 %888
    %v891 = vmul.f32 %v884, %v889
    %893 = vrot.lane.b32.xlu0 %v891, 32
    %v894 = vpop.permute.xlu0 %893
    %v896 = vadd.f32 %v886, %v894
    %v897 = vtanh.pop %v896
    %899 = vrot.lane.b32.xlu0 %v897, 32
    %v900 = vpop.permute.xlu0 %899
    %v902 = vmul.f32 %v884, %v900
    %903 = vmatpush.msra.mxu0 0.0
    %904 = vmatpush.msra.mxu0 0.0
    %905 = vmatpush.msra.mxu0 0.0
    %906 = vmatpush.msra.mxu0 0.0
    %907 = vmatpush.msra.mxu0 0.0
    %908 = vmatpush.msra.mxu0 0.0
    %909 = vmatpush.msra.mxu0 0.0
    %910 = vmatpush.msra.mxu0 0.0
    %911 = vmatpush.msra.mxu0 0.0
    %912 = vmatpush.msra.mxu0 0.0
    %913 = vmatpush.msra.mxu0 0.0
    %914 = vmatpush.msra.mxu0 0.0
    %915 = vmatpush.msra.mxu0 %v105
    %916 = vmatpush.msra.mxu0 %v104
    %917 = vmatpush.msra.mxu0 %v103
    %918 = vmatpush.msra.mxu0 %v102
    %919 = vmatmul.f32.gmra.mxu0 %v818
    %v920 = vpop.f32.mrf.mxu0
    %v921 = vadd.f32 0.0, %v920
    %922 = vdwg.mxu0
    %v924 = vrot.slane %v921, 6
    %v926 = vadd.f32 %v148, %v924
    %v927 = vxor.u32 %v926, 2147483648
    %v928 = vmul.f32 %v927, 1.442695
    %v929 = vpow.pop %v928
    %v930 = vadd.f32 %v929, 1.0
    %v931 = vrcp.pop %v930
    %v932 = vmul.f32 %v930, %v931
    %v933 = vsub.f32 1.0, %v932
    %v934 = vmul.f32 %v931, %v933
    %v935 = vadd.f32 %v931, %v934
    %vm936 = vweird.f32 %v930
    %vm937 = vweird.f32 %v931
    %vm938 = vmor %vm936, %vm937
    %v939 = vsel %vm938, %v931, %v935
    %v940 = vand.u32 2147483647, %v930
    %vm941 = vcmp.eq.f32.partialorder %v940, 8.507059e+37
    %v942 = vand.u32 %v930, 2147483648
    %v943 = vor.u32 1.1754944e-38, %v942
    %v944 = vsel %vm941, %v943, %v939
    %v945 = vmul.f32 1.0, %v944
    %v946 = vtanh.pop %v926
    %v948 = vrot.slane %v808, 6
    %v950 = vmul.f32 %v945, %v948
    %952 = vrot.lane.b32.xlu0 %v946, 32
    %v953 = vpop.permute.xlu0 %952
    %v955 = vmul.f32 %v945, %v953
    %957 = vrot.lane.b32.xlu0 %v955, 32
    %v958 = vpop.permute.xlu0 %957
    %v960 = vadd.f32 %v950, %v958
    %v961 = vtanh.pop %v960
    %963 = vrot.lane.b32.xlu0 %v961, 32
    %v964 = vpop.permute.xlu0 %963
    %v966 = vmul.f32 %v945, %v964
    %v968 = vrot.slane %v966, 2
    %969 = vrot.lane.b32.xlu0 %v968, 64
    %v970 = vpop.permute.xlu0 %969
    %v971 = vsel %vm150, %v970, 0
    %973 = vmatpush.msra.mxu0 0.0
    %974 = vmatpush.msra.mxu0 0.0
    %975 = vmatpush.msra.mxu0 0.0
    %976 = vmatpush.msra.mxu0 0.0
    %977 = vmatpush.msra.mxu0 0.0
    %978 = vmatpush.msra.mxu0 0.0
    %979 = vmatpush.msra.mxu0 0.0
    %980 = vmatpush.msra.mxu0 0.0
    %981 = vmatpush.msra.mxu0 0.0
    %982 = vmatpush.msra.mxu0 0.0
    %983 = vmatpush.msra.mxu0 0.0
    %984 = vmatpush.msra.mxu0 0.0
    %985 = vmatpush.msra.mxu0 %v101
    %986 = vmatpush.msra.mxu0 %v100
    %987 = vmatpush.msra.mxu0 %v99
    %988 = vmatpush.msra.mxu0 %v98
    %989 = vmatmul.f32.gmra.mxu0 %v971
    %v990 = vpop.f32.mrf.mxu0
    %v991 = vadd.f32 0.0, %v990
    %992 = vdwg.mxu0
    %994 = vrot.lane.b32.xlu0 %v902, 64
    %v995 = vpop.permute.xlu0 %994
    %v996 = vsel %vm150, %v995, 0
    %998 = vmatpush.msra.mxu0 0.0
    %999 = vmatpush.msra.mxu0 0.0
    %1000 = vmatpush.msra.mxu0 0.0
    %1001 = vmatpush.msra.mxu0 0.0
    %1002 = vmatpush.msra.mxu0 0.0
    %1003 = vmatpush.msra.mxu0 0.0
    %1004 = vmatpush.msra.mxu0 0.0
    %1005 = vmatpush.msra.mxu0 0.0
    %1006 = vmatpush.msra.mxu0 0.0
    %1007 = vmatpush.msra.mxu0 0.0
    %1008 = vmatpush.msra.mxu0 0.0
    %1009 = vmatpush.msra.mxu0 0.0
    %1010 = vmatpush.msra.mxu0 %v109
    %1011 = vmatpush.msra.mxu0 %v108
    %1012 = vmatpush.msra.mxu0 %v107
    %1013 = vmatpush.msra.mxu0 %v106
    %1014 = vmatmul.f32.gmra.mxu0 %v996
    %v1015 = vpop.f32.mrf.mxu0
    %v1016 = vadd.f32 %v991, %v1015
    %1017 = vdwg.mxu0
    %v1018 = vadd.f32 %v1016, %v112
    %v1019 = vxor.u32 %v1018, 2147483648
    %v1020 = vmul.f32 %v1019, 1.442695
    %v1021 = vpow.pop %v1020
    %v1022 = vadd.f32 %v1021, 1.0
    %v1023 = vrcp.pop %v1022
    %v1024 = vmul.f32 %v1022, %v1023
    %v1025 = vsub.f32 1.0, %v1024
    %v1026 = vmul.f32 %v1023, %v1025
    %v1027 = vadd.f32 %v1023, %v1026
    %vm1028 = vweird.f32 %v1022
    %vm1029 = vweird.f32 %v1023
    %vm1030 = vmor %vm1028, %vm1029
    %v1031 = vsel %vm1030, %v1023, %v1027
    %v1032 = vand.u32 2147483647, %v1022
    %vm1033 = vcmp.eq.f32.partialorder %v1032, 8.507059e+37
    %v1034 = vand.u32 %v1022, 2147483648
    %v1035 = vor.u32 1.1754944e-38, %v1034
    %v1036 = vsel %vm1033, %v1035, %v1031
    %v1037 = vmul.f32 1.0, %v1036
    %v1038 = vtanh.pop %v1018
    %v1039 = vmul.f32 %v1037, %v896
    %1041 = vrot.lane.b32.xlu0 %v1038, 32
    %v1042 = vpop.permute.xlu0 %1041
    %v1044 = vmul.f32 %v1037, %v1042
    %1046 = vrot.lane.b32.xlu0 %v1044, 32
    %v1047 = vpop.permute.xlu0 %1046
    %v1049 = vadd.f32 %v1039, %v1047
    %v1050 = vtanh.pop %v1049
    %1052 = vrot.lane.b32.xlu0 %v1050, 32
    %v1053 = vpop.permute.xlu0 %1052
    %v1055 = vmul.f32 %v1037, %v1053
    %1056 = vmatpush.msra.mxu0 0.0
    %1057 = vmatpush.msra.mxu0 0.0
    %1058 = vmatpush.msra.mxu0 0.0
    %1059 = vmatpush.msra.mxu0 0.0
    %1060 = vmatpush.msra.mxu0 0.0
    %1061 = vmatpush.msra.mxu0 0.0
    %1062 = vmatpush.msra.mxu0 0.0
    %1063 = vmatpush.msra.mxu0 0.0
    %1064 = vmatpush.msra.mxu0 0.0
    %1065 = vmatpush.msra.mxu0 0.0
    %1066 = vmatpush.msra.mxu0 0.0
    %1067 = vmatpush.msra.mxu0 0.0
    %1068 = vmatpush.msra.mxu0 %v105
    %1069 = vmatpush.msra.mxu0 %v104
    %1070 = vmatpush.msra.mxu0 %v103
    %1071 = vmatpush.msra.mxu0 %v102
    %1072 = vmatmul.f32.gmra.mxu0 %v971
    %v1073 = vpop.f32.mrf.mxu0
    %v1074 = vadd.f32 0.0, %v1073
    %1075 = vdwg.mxu0
    %v1077 = vrot.slane %v1074, 4
    %v1079 = vadd.f32 %v148, %v1077
    %v1080 = vxor.u32 %v1079, 2147483648
    %v1081 = vmul.f32 %v1080, 1.442695
    %v1082 = vpow.pop %v1081
    %v1083 = vadd.f32 %v1082, 1.0
    %v1084 = vrcp.pop %v1083
    %v1085 = vmul.f32 %v1083, %v1084
    %v1086 = vsub.f32 1.0, %v1085
    %v1087 = vmul.f32 %v1084, %v1086
    %v1088 = vadd.f32 %v1084, %v1087
    %vm1089 = vweird.f32 %v1083
    %vm1090 = vweird.f32 %v1084
    %vm1091 = vmor %vm1089, %vm1090
    %v1092 = vsel %vm1091, %v1084, %v1088
    %v1093 = vand.u32 2147483647, %v1083
    %vm1094 = vcmp.eq.f32.partialorder %v1093, 8.507059e+37
    %v1095 = vand.u32 %v1083, 2147483648
    %v1096 = vor.u32 1.1754944e-38, %v1095
    %v1097 = vsel %vm1094, %v1096, %v1092
    %v1098 = vmul.f32 1.0, %v1097
    %v1099 = vtanh.pop %v1079
    %v1101 = vrot.slane %v960, 6
    %v1103 = vmul.f32 %v1098, %v1101
    %1105 = vrot.lane.b32.xlu0 %v1099, 32
    %v1106 = vpop.permute.xlu0 %1105
    %v1108 = vmul.f32 %v1098, %v1106
    %1110 = vrot.lane.b32.xlu0 %v1108, 32
    %v1111 = vpop.permute.xlu0 %1110
    %v1113 = vadd.f32 %v1103, %v1111
    %v1114 = vtanh.pop %v1113
    %1116 = vrot.lane.b32.xlu0 %v1114, 32
    %v1117 = vpop.permute.xlu0 %1116
    %v1119 = vmul.f32 %v1098, %v1117
    %v1121 = vrot.slane %v1119, 4
    %1122 = vrot.lane.b32.xlu0 %v1121, 64
    %v1123 = vpop.permute.xlu0 %1122
    %v1124 = vsel %vm150, %v1123, 0
    %1126 = vmatpush.msra.mxu0 0.0
    %1127 = vmatpush.msra.mxu0 0.0
    %1128 = vmatpush.msra.mxu0 0.0
    %1129 = vmatpush.msra.mxu0 0.0
    %1130 = vmatpush.msra.mxu0 0.0
    %1131 = vmatpush.msra.mxu0 0.0
    %1132 = vmatpush.msra.mxu0 0.0
    %1133 = vmatpush.msra.mxu0 0.0
    %1134 = vmatpush.msra.mxu0 0.0
    %1135 = vmatpush.msra.mxu0 0.0
    %1136 = vmatpush.msra.mxu0 0.0
    %1137 = vmatpush.msra.mxu0 0.0
    %1138 = vmatpush.msra.mxu0 %v101
    %1139 = vmatpush.msra.mxu0 %v100
    %1140 = vmatpush.msra.mxu0 %v99
    %1141 = vmatpush.msra.mxu0 %v98
    %1142 = vmatmul.f32.gmra.mxu0 %v1124
    %v1143 = vpop.f32.mrf.mxu0
    %v1144 = vadd.f32 0.0, %v1143
    %1145 = vdwg.mxu0
    %1147 = vrot.lane.b32.xlu0 %v1055, 64
    %v1148 = vpop.permute.xlu0 %1147
    %v1149 = vsel %vm150, %v1148, 0
    %1151 = vmatpush.msra.mxu0 0.0
    %1152 = vmatpush.msra.mxu0 0.0
    %1153 = vmatpush.msra.mxu0 0.0
    %1154 = vmatpush.msra.mxu0 0.0
    %1155 = vmatpush.msra.mxu0 0.0
    %1156 = vmatpush.msra.mxu0 0.0
    %1157 = vmatpush.msra.mxu0 0.0
    %1158 = vmatpush.msra.mxu0 0.0
    %1159 = vmatpush.msra.mxu0 0.0
    %1160 = vmatpush.msra.mxu0 0.0
    %1161 = vmatpush.msra.mxu0 0.0
    %1162 = vmatpush.msra.mxu0 0.0
    %1163 = vmatpush.msra.mxu0 %v109
    %1164 = vmatpush.msra.mxu0 %v108
    %1165 = vmatpush.msra.mxu0 %v107
    %1166 = vmatpush.msra.mxu0 %v106
    %1167 = vmatmul.f32.gmra.mxu0 %v1149
    %v1168 = vpop.f32.mrf.mxu0
    %v1169 = vadd.f32 %v1144, %v1168
    %1170 = vdwg.mxu0
    %v1171 = vadd.f32 %v1169, %v112
    %v1172 = vxor.u32 %v1171, 2147483648
    %v1173 = vmul.f32 %v1172, 1.442695
    %v1174 = vpow.pop %v1173
    %v1175 = vadd.f32 %v1174, 1.0
    %v1176 = vrcp.pop %v1175
    %v1177 = vmul.f32 %v1175, %v1176
    %v1178 = vsub.f32 1.0, %v1177
    %v1179 = vmul.f32 %v1176, %v1178
    %v1180 = vadd.f32 %v1176, %v1179
    %vm1181 = vweird.f32 %v1175
    %vm1182 = vweird.f32 %v1176
    %vm1183 = vmor %vm1181, %vm1182
    %v1184 = vsel %vm1183, %v1176, %v1180
    %v1185 = vand.u32 2147483647, %v1175
    %vm1186 = vcmp.eq.f32.partialorder %v1185, 8.507059e+37
    %v1187 = vand.u32 %v1175, 2147483648
    %v1188 = vor.u32 1.1754944e-38, %v1187
    %v1189 = vsel %vm1186, %v1188, %v1184
    %v1190 = vmul.f32 1.0, %v1189
    %v1191 = vtanh.pop %v1171
    %v1192 = vmul.f32 %v1190, %v1049
    %1194 = vrot.lane.b32.xlu0 %v1191, 32
    %v1195 = vpop.permute.xlu0 %1194
    %v1197 = vmul.f32 %v1190, %v1195
    %1199 = vrot.lane.b32.xlu0 %v1197, 32
    %v1200 = vpop.permute.xlu0 %1199
    %v1202 = vadd.f32 %v1192, %v1200
    %v1203 = vtanh.pop %v1202
    %1205 = vrot.lane.b32.xlu0 %v1203, 32
    %v1206 = vpop.permute.xlu0 %1205
    %v1208 = vmul.f32 %v1190, %v1206
    %1209 = vmatpush.msra.mxu0 0.0
    %1210 = vmatpush.msra.mxu0 0.0
    %1211 = vmatpush.msra.mxu0 0.0
    %1212 = vmatpush.msra.mxu0 0.0
    %1213 = vmatpush.msra.mxu0 0.0
    %1214 = vmatpush.msra.mxu0 0.0
    %1215 = vmatpush.msra.mxu0 0.0
    %1216 = vmatpush.msra.mxu0 0.0
    %1217 = vmatpush.msra.mxu0 0.0
    %1218 = vmatpush.msra.mxu0 0.0
    %1219 = vmatpush.msra.mxu0 0.0
    %1220 = vmatpush.msra.mxu0 0.0
    %1221 = vmatpush.msra.mxu0 %v105
    %1222 = vmatpush.msra.mxu0 %v104
    %1223 = vmatpush.msra.mxu0 %v103
    %1224 = vmatpush.msra.mxu0 %v102
    %1225 = vmatmul.f32.gmra.mxu0 %v1124
    %v1226 = vpop.f32.mrf.mxu0
    %v1227 = vadd.f32 0.0, %v1226
    %1228 = vdwg.mxu0
    %v1230 = vrot.slane %v1227, 2
    %v1232 = vadd.f32 %v148, %v1230
    %v1233 = vxor.u32 %v1232, 2147483648
    %v1234 = vmul.f32 %v1233, 1.442695
    %v1235 = vpow.pop %v1234
    %v1236 = vadd.f32 %v1235, 1.0
    %v1237 = vrcp.pop %v1236
    %v1238 = vmul.f32 %v1236, %v1237
    %v1239 = vsub.f32 1.0, %v1238
    %v1240 = vmul.f32 %v1237, %v1239
    %v1241 = vadd.f32 %v1237, %v1240
    %vm1242 = vweird.f32 %v1236
    %vm1243 = vweird.f32 %v1237
    %vm1244 = vmor %vm1242, %vm1243
    %v1245 = vsel %vm1244, %v1237, %v1241
    %v1246 = vand.u32 2147483647, %v1236
    %vm1247 = vcmp.eq.f32.partialorder %v1246, 8.507059e+37
    %v1248 = vand.u32 %v1236, 2147483648
    %v1249 = vor.u32 1.1754944e-38, %v1248
    %v1250 = vsel %vm1247, %v1249, %v1245
    %v1251 = vmul.f32 1.0, %v1250
    %v1252 = vtanh.pop %v1232
    %v1254 = vrot.slane %v1113, 6
    %v1256 = vmul.f32 %v1251, %v1254
    %1258 = vrot.lane.b32.xlu0 %v1252, 32
    %v1259 = vpop.permute.xlu0 %1258
    %v1261 = vmul.f32 %v1251, %v1259
    %1263 = vrot.lane.b32.xlu0 %v1261, 32
    %v1264 = vpop.permute.xlu0 %1263
    %v1266 = vadd.f32 %v1256, %v1264
    %v1267 = vtanh.pop %v1266
    %1269 = vrot.lane.b32.xlu0 %v1267, 32
    %v1270 = vpop.permute.xlu0 %1269
    %v1272 = vmul.f32 %v1251, %v1270
    %v1274 = vrot.slane %v1272, 6
    %1275 = vrot.lane.b32.xlu0 %v1274, 64
    %v1276 = vpop.permute.xlu0 %1275
    %v1277 = vsel %vm150, %v1276, 0
    %1279 = vmatpush.msra.mxu0 0.0
    %1280 = vmatpush.msra.mxu0 0.0
    %1281 = vmatpush.msra.mxu0 0.0
    %1282 = vmatpush.msra.mxu0 0.0
    %1283 = vmatpush.msra.mxu0 0.0
    %1284 = vmatpush.msra.mxu0 0.0
    %1285 = vmatpush.msra.mxu0 0.0
    %1286 = vmatpush.msra.mxu0 0.0
    %1287 = vmatpush.msra.mxu0 0.0
    %1288 = vmatpush.msra.mxu0 0.0
    %1289 = vmatpush.msra.mxu0 0.0
    %1290 = vmatpush.msra.mxu0 0.0
    %1291 = vmatpush.msra.mxu0 %v101
    %1292 = vmatpush.msra.mxu0 %v100
    %1293 = vmatpush.msra.mxu0 %v99
    %1294 = vmatpush.msra.mxu0 %v98
    %1295 = vmatmul.f32.gmra.mxu0 %v1277
    %v1296 = vpop.f32.mrf.mxu0
    %v1297 = vadd.f32 0.0, %v1296
    %1298 = vdwg.mxu0
    %1300 = vrot.lane.b32.xlu0 %v1208, 64
    %v1301 = vpop.permute.xlu0 %1300
    %v1302 = vsel %vm150, %v1301, 0
    %1304 = vmatpush.msra.mxu0 0.0
    %1305 = vmatpush.msra.mxu0 0.0
    %1306 = vmatpush.msra.mxu0 0.0
    %1307 = vmatpush.msra.mxu0 0.0
    %1308 = vmatpush.msra.mxu0 0.0
    %1309 = vmatpush.msra.mxu0 0.0
    %1310 = vmatpush.msra.mxu0 0.0
    %1311 = vmatpush.msra.mxu0 0.0
    %1312 = vmatpush.msra.mxu0 0.0
    %1313 = vmatpush.msra.mxu0 0.0
    %1314 = vmatpush.msra.mxu0 0.0
    %1315 = vmatpush.msra.mxu0 0.0
    %1316 = vmatpush.msra.mxu0 %v109
    %1317 = vmatpush.msra.mxu0 %v108
    %1318 = vmatpush.msra.mxu0 %v107
    %1319 = vmatpush.msra.mxu0 %v106
    %1320 = vmatmul.f32.gmra.mxu0 %v1302
    %v1321 = vpop.f32.mrf.mxu0
    %v1322 = vadd.f32 %v1297, %v1321
    %1323 = vdwg.mxu0
    %v1324 = vadd.f32 %v1322, %v112
    %v1325 = vxor.u32 %v1324, 2147483648
    %v1326 = vmul.f32 %v1325, 1.442695
    %v1327 = vpow.pop %v1326
    %v1328 = vadd.f32 %v1327, 1.0
    %v1329 = vrcp.pop %v1328
    %v1330 = vmul.f32 %v1328, %v1329
    %v1331 = vsub.f32 1.0, %v1330
    %v1332 = vmul.f32 %v1329, %v1331
    %v1333 = vadd.f32 %v1329, %v1332
    %vm1334 = vweird.f32 %v1328
    %vm1335 = vweird.f32 %v1329
    %vm1336 = vmor %vm1334, %vm1335
    %v1337 = vsel %vm1336, %v1329, %v1333
    %v1338 = vand.u32 2147483647, %v1328
    %vm1339 = vcmp.eq.f32.partialorder %v1338, 8.507059e+37
    %v1340 = vand.u32 %v1328, 2147483648
    %v1341 = vor.u32 1.1754944e-38, %v1340
    %v1342 = vsel %vm1339, %v1341, %v1337
    %v1343 = vmul.f32 1.0, %v1342
    %v1344 = vtanh.pop %v1324
    %v1345 = vmul.f32 %v1343, %v1202
    %1347 = vrot.lane.b32.xlu0 %v1344, 32
    %v1348 = vpop.permute.xlu0 %1347
    %v1350 = vmul.f32 %v1343, %v1348
    %1352 = vrot.lane.b32.xlu0 %v1350, 32
    %v1353 = vpop.permute.xlu0 %1352
    %v1355 = vadd.f32 %v1345, %v1353
    %v1356 = vtanh.pop %v1355
    %1358 = vrot.lane.b32.xlu0 %v1356, 32
    %v1359 = vpop.permute.xlu0 %1358
    %v1361 = vmul.f32 %v1343, %v1359
    %v1362 = vld [vmem:[%s7] sm:$0xff]
    %v1363 = vld [vmem:[%s7 + $0x8] sm:$0xff]
    %v1364 = vld [vmem:[%s7 + $0x10] sm:$0xff]
    %v1365 = vld [vmem:[%s7 + $0x18] sm:$0xff]
    %v1366 = vld [vmem:[%s8] sm:$0x1]
    %v1368 = vperm.slane %v1366, 0
    %1371 = vrot.lane.b32.xlu0 %v1361, 64
    %v1372 = vpop.permute.xlu0 %1371
    %v1373 = vsel %vm150, %v1372, 0
    %1375 = vmatpush.msra.mxu0 0.0
    %1376 = vmatpush.msra.mxu0 0.0
    %1377 = vmatpush.msra.mxu0 0.0
    %1378 = vmatpush.msra.mxu0 0.0
    %1379 = vmatpush.msra.mxu0 0.0
    %1380 = vmatpush.msra.mxu0 0.0
    %1381 = vmatpush.msra.mxu0 0.0
    %1382 = vmatpush.msra.mxu0 0.0
    %1383 = vmatpush.msra.mxu0 0.0
    %1384 = vmatpush.msra.mxu0 0.0
    %1385 = vmatpush.msra.mxu0 0.0
    %1386 = vmatpush.msra.mxu0 0.0
    %1387 = vmatpush.msra.mxu0 %v1365
    %1388 = vmatpush.msra.mxu0 %v1364
    %1389 = vmatpush.msra.mxu0 %v1363
    %1390 = vmatpush.msra.mxu0 %v1362
    %1391 = vmatmul.f32.gmra.mxu0 %v1373
    %v1392 = vpop.f32.mrf.mxu0
    %v1393 = vadd.f32 %v1368, %v1392
    %1394 = vdwg.mxu0
    %vm1395 = vcmask 25600
    %1396 = vst.msk [vmem:[#allocation10] sm:$0x3] %vm1395, %v1393
    // Predicated region
    $region54: #{tpu_custom_call.1} parent=1 // pred_check
      _
    $region55: #{tpu_custom_call.1} parent=1 // pred_check_branch
      %1398 = sbr.rel (0) target = $region57
    $region56: #{tpu_custom_call.1} parent=1 // pred_region
      %1400 = vsyncadd [#allocation4], 0
      %s1402 = sshll.u32 [#allocation10], 4
      %s1403 = int_to_ptr.vmem [resolvable:$true] %s1402
      %s1404 = sshll.u32 %s9, 4
      %s1405 = int_to_ptr.hbm [resolvable:$true] %s1404
      %1407 = dma.vmem_to_hbm [thread:$0]  %s1403, 32, %s1405, [#allocation4]
    $region57: #{tpu_custom_call.1} parent=1 // pred_fallthru
      _
    // Predicated region
    $region58: #{tpu_custom_call.1} parent=1 // pred_check
      _
    $region59: #{tpu_custom_call.1} parent=1 // pred_check_branch
      %1409 = sbr.rel (0) target = $region61
    $region60: #{tpu_custom_call.1} parent=1 // pred_region
      %1411 = dma.done [#allocation4], 32
    $region61: #{tpu_custom_call.1} parent=1 // pred_fallthru
      _
    %1412 = vsyncpa [#allocation3], 1
    %1413 = vsyncpa [#allocation6], 1
    %1414 = vsyncpa [#allocation9], 1
    %1415 = vsyncpa [#allocation4], 1

</llo_original>
